<compile_context>
chip_gen: v7x
topology: tpu7x:2x2x1
jax: 0.10.0
libtpu: 0.0.40
codegen_flags: <defaults>
</compile_context>

<pallas_src>
import functools
import math

import jax
import jax.numpy as jnp
from jax.experimental import pallas as pl
from jax.experimental.pallas import tpu as pltpu

# Device-aware scoped-VMEM limit: ~half of physical VMEM (32 MiB on v7x,
# 64 MiB on v5e/v6e), capped at 96 MiB.
try:
    _PHYS_VMEM = pltpu.get_tpu_info().vmem_capacity_bytes
except Exception:  # conservative fallback if the query is unavailable
    _PHYS_VMEM = 64 * 1024 * 1024
_VMEM_LIMIT = min(96 * 1024 * 1024, _PHYS_VMEM // 2)


def _pick_tile(dim, target, floor):
    """Largest divisor of `dim` that is <= target, preferring multiples of
    `floor` (layout alignment).  For dim > target it never returns more than
    `target`, so awkward dims cannot silently blow the VMEM budget."""
    if dim <= target:
        return dim
    fallback = None
    for t in range(target, 0, -1):
        if dim % t == 0:
            if t % floor == 0:
                return t
            if fallback is None:
                fallback = t
    return fallback if fallback is not None else dim


# ----------------------------------------------------------------------------
# Fused tiled matmul: bias [+ activation] [+ residual] [+ layernorm]
# ----------------------------------------------------------------------------
def _fused_linear_kernel(*refs, activation, has_residual, has_ln):
    x_ref, w_ref, b_ref = refs[:3]
    idx = 3
    res_ref = g_ref = be_ref = None
    if has_residual:
        res_ref = refs[idx]
        idx += 1
    if has_ln:
        g_ref, be_ref = refs[idx], refs[idx + 1]
        idx += 2
    o_ref, acc_ref = refs[idx], refs[idx + 1]

    k = pl.program_id(2)

    @pl.when(k == 0)
    def _():
        acc_ref[...] = jnp.zeros_like(acc_ref)

    # bf16 x bf16 on the MXU with f32 accumulation.  The per-tile casts are
    # no-ops at every call site (operands are already bf16); no wrapper-side
    # full-tensor HBM cast passes.
    acc_ref[...] += jnp.dot(x_ref[...].astype(jnp.bfloat16),
                            w_ref[...].astype(jnp.bfloat16),
                            preferred_element_type=jnp.float32)

    @pl.when(k == pl.num_programs(2) - 1)
    def _():
        y = acc_ref[...] + b_ref[...]
        if activation == "gelu":
            # TODO(synk): HF BERT "gelu" is exact erf-GELU; tanh approximation
            # used to guarantee Mosaic lowering (diff ~1e-3).
            c = math.sqrt(2.0 / math.pi)
            y = 0.5 * y * (1.0 + jnp.tanh(c * (y + 0.044715 * y * y * y)))
        elif activation == "tanh":
            y = jnp.tanh(y)
        if has_residual:
            y = y + res_ref[...].astype(jnp.float32)
        if has_ln:
            mean = jnp.mean(y, axis=-1, keepdims=True)
            var = jnp.mean(jnp.square(y - mean), axis=-1, keepdims=True)
            y = (y - mean) * jax.lax.rsqrt(var + 1e-12) * g_ref[...] + be_ref[...]
        o_ref[...] = y.astype(o_ref.dtype)


def fused_linear(x, w, b, *, activation="none", residual=None, ln=None,
                 out_dtype=jnp.bfloat16, tm=512, tn=512, tk=1024):
    """x:(M,K) bf16, w:(K,N) bf16, b:(N,) f32. Optional residual:(M,N) bf16,
    ln=(gamma, beta). Output (M,N) in out_dtype (bf16 by default)."""
    M, K = x.shape
    N = w.shape[1]
    tm = _pick_tile(M, tm, 16)          # bf16 packs (16, 128) per vreg
    tk = _pick_tile(K, tk, 128)
    # Layernorm needs the full feature row in one tile.
    tn = N if ln is not None else _pick_tile(N, tn, 128)
    grid = (M // tm, N // tn, K // tk)

    args = [x, w, b.reshape(1, N).astype(jnp.float32)]
    in_specs = [
        pl.BlockSpec((tm, tk), lambda i, j, k: (i, k)),
        pl.BlockSpec((tk, tn), lambda i, j, k: (k, j)),
        pl.BlockSpec((1, tn), lambda i, j, k: (0, j)),
    ]
    if residual is not None:
        args.append(residual)
        in_specs.append(pl.BlockSpec((tm, tn), lambda i, j, k: (i, j)))
    if ln is not None:
        gamma, beta = ln
        args += [gamma.reshape(1, N).astype(jnp.float32),
                 beta.reshape(1, N).astype(jnp.float32)]
        in_specs += [pl.BlockSpec((1, tn), lambda i, j, k: (0, j)),
                     pl.BlockSpec((1, tn), lambda i, j, k: (0, j))]

    # TODO(synk): if a bundle dump shows exposed DMA on the x/w streams after
    # the larger tiles, bump those BlockSpecs to pipeline_mode=pl.Buffered(3).
    return pl.pallas_call(
        functools.partial(_fused_linear_kernel, activation=activation,
                          has_residual=residual is not None,
                          has_ln=ln is not None),
        out_shape=jax.ShapeDtypeStruct((M, N), out_dtype),
        grid=grid,
        in_specs=in_specs,
        out_specs=pl.BlockSpec((tm, tn), lambda i, j, k: (i, j)),
        scratch_shapes=[pltpu.VMEM((tm, tn), jnp.float32)],
        compiler_params=pltpu.CompilerParams(
            dimension_semantics=("parallel", "parallel", "arbitrary"),
            vmem_limit_bytes=_VMEM_LIMIT),
    )(*args)


# ----------------------------------------------------------------------------
# Embeddings: fused (word + position + token_type) sum + layernorm
# ----------------------------------------------------------------------------
def _embed_ln_kernel(we_ref, pe_ref, te_ref, g_ref, b_ref, o_ref):
    x = we_ref[0] + pe_ref[...] + te_ref[...]
    mean = jnp.mean(x, axis=-1, keepdims=True)
    var = jnp.mean(jnp.square(x - mean), axis=-1, keepdims=True)
    y = (x - mean) * jax.lax.rsqrt(var + 1e-12) * g_ref[...] + b_ref[...]
    o_ref[0] = y.astype(o_ref.dtype)


def embed_layernorm(we, pe, te, gamma, beta, *, ts=256):
    """we:(B,S,H) f32 gathered word embeddings; pe:(S,H); te:(1,H).
    Returns layernormed embeddings in bf16 (the residual-stream dtype)."""
    B, S, H = we.shape
    ts = _pick_tile(S, ts, 8)
    return pl.pallas_call(
        _embed_ln_kernel,
        out_shape=jax.ShapeDtypeStruct((B, S, H), jnp.bfloat16),
        grid=(B, S // ts),
        in_specs=[pl.BlockSpec((1, ts, H), lambda b, s: (b, s, 0)),
                  pl.BlockSpec((ts, H), lambda b, s: (s, 0)),
                  pl.BlockSpec((1, H), lambda b, s: (0, 0)),
                  pl.BlockSpec((1, H), lambda b, s: (0, 0)),
                  pl.BlockSpec((1, H), lambda b, s: (0, 0))],
        out_specs=pl.BlockSpec((1, ts, H), lambda b, s: (b, s, 0)),
        compiler_params=pltpu.CompilerParams(
            dimension_semantics=("parallel", "parallel"),
            vmem_limit_bytes=_VMEM_LIMIT),
    )(we, pe, te, gamma.reshape(1, H), beta.reshape(1, H))


# ----------------------------------------------------------------------------
# Attention: grid (batch, query-tile); fused QKV consumed directly; heads
# sliced in-kernel; output written as one lane-dense (tq, H) block.
# ----------------------------------------------------------------------------
def _attention_kernel(qkv_ref, bias_ref, o_ref, *, nH, dH, tq, scale):
    H = nH * dH
    q0 = pl.multiple_of(pl.program_id(1) * tq, tq)
    bias = bias_ref[0]                                   # (1, S) key-axis bias
    # Static per-head lane slices of the resident (S, 3H) QKV block; only one
    # head's (tq, S) score block is live at a time.
    for h in range(nH):
        q = qkv_ref[0, pl.ds(q0, tq), h * dH:(h + 1) * dH]            # (tq,dH)
        k = qkv_ref[0, :, H + h * dH:H + (h + 1) * dH]                # (S, dH)
        v = qkv_ref[0, :, 2 * H + h * dH:2 * H + (h + 1) * dH]        # (S, dH)
        s = jax.lax.dot_general(q, k, (((1,), (1,)), ((), ())),
                                preferred_element_type=jnp.float32)   # (tq, S)
        s = s * scale + bias
        s = s - jnp.max(s, axis=-1, keepdims=True)
        p = jnp.exp(s)
        # approx reciprocal rides the EUP slot; ~2^-14 rel. error in softmax.
        p = p * pl.reciprocal(jnp.sum(p, axis=-1, keepdims=True), approx=True)
        o = jnp.dot(p.astype(v.dtype), v,
                    preferred_element_type=jnp.float32)               # (tq,dH)
        o_ref[0, :, h * dH:(h + 1) * dH] = o.astype(o_ref.dtype)


def attention(qkv, mask_bias, *, num_heads, scale, tq=256):
    """qkv:(B,S,3H) bf16 (fused QKV projection output); mask_bias:(B,1,S) f32.
    Returns merged context (B,S,H) bf16 with lane-dense HBM stores."""
    B, S, threeH = qkv.shape
    H = threeH // 3
    dH = H // num_heads
    tq = _pick_tile(S, tq, 8)
    return pl.pallas_call(
        functools.partial(_attention_kernel, nH=num_heads, dH=dH, tq=tq,
                          scale=scale),
        out_shape=jax.ShapeDtypeStruct((B, S, H), jnp.bfloat16),
        grid=(B, S // tq),
        in_specs=[
            # index_map ignores the query-tile axis -> the whole-batch QKV
            # block stays resident in VMEM (one HBM fetch per batch element).
            pl.BlockSpec((1, S, threeH), lambda b, sq: (b, 0, 0)),
            pl.BlockSpec((1, 1, S), lambda b, sq: (b, 0, 0)),
        ],
        out_specs=pl.BlockSpec((1, tq, H), lambda b, sq: (b, sq, 0)),
        compiler_params=pltpu.CompilerParams(
            dimension_semantics=("parallel", "arbitrary"),
            vmem_limit_bytes=_VMEM_LIMIT),
    )(qkv, mask_bias)


# ----------------------------------------------------------------------------
# Pooler + both classification heads in one kernel
# ----------------------------------------------------------------------------
def _pooler_heads_kernel(cls_ref, wp_ref, bp_ref, wh_ref, bh_ref, o_ref):
    pooled = jnp.tanh(jnp.dot(cls_ref[...].astype(jnp.bfloat16), wp_ref[...],
                              preferred_element_type=jnp.float32) + bp_ref[...])
    logits = jnp.dot(pooled.astype(wh_ref.dtype), wh_ref[...],
                     preferred_element_type=jnp.float32) + bh_ref[...]
    o_ref[...] = logits


def pooler_and_heads(cls, wp, bp, wh, bh):
    B, H = cls.shape
    NO = wh.shape[1]
    vmem = pltpu.MemorySpace.VMEM
    return pl.pallas_call(
        _pooler_heads_kernel,
        out_shape=jax.ShapeDtypeStruct((B, NO), jnp.float32),
        in_specs=[pl.BlockSpec(memory_space=vmem)] * 5,
        out_specs=pl.BlockSpec(memory_space=vmem),
        compiler_params=pltpu.CompilerParams(vmem_limit_bytes=_VMEM_LIMIT),
    )(cls, wp, bp.reshape(1, H).astype(jnp.float32),
      wh, bh.reshape(1, NO).astype(jnp.float32))


# ----------------------------------------------------------------------------
# Parameter init (deterministic, synthetic — BERT-style ~N(0, 0.02))
# ----------------------------------------------------------------------------
def init_params(key, cfg):
    H, I = cfg["hidden"], cfg["intermediate"]
    nr, ns = cfg["num_request_labels"], cfg["num_sub_request_labels"]

    def dense(k, shape):
        # Matmul weights stored in bf16 (MXU operand dtype).
        # TODO(synk): on v7x these could be fp8 + per-channel scales.
        return (jax.random.normal(k, shape, dtype=jnp.float32) * 0.02
                ).astype(jnp.bfloat16)

    keys = iter(jax.random.split(key, 64))
    params = {
        "word_emb": jax.random.normal(next(keys), (cfg["vocab"], H), jnp.float32) * 0.02,
        "pos_emb": jax.random.normal(next(keys), (cfg["max_pos"], H), jnp.float32) * 0.02,
        "type_emb": jax.random.normal(next(keys), (2, H), jnp.float32) * 0.02,
        "emb_ln_g": jnp.ones((H,), jnp.float32),
        "emb_ln_b": jnp.zeros((H,), jnp.float32),
        "layers": [],
        # pooler
        "wp": dense(next(keys), (H, H)),
        "bp": jnp.zeros((H,), jnp.float32),
        # multi-task heads, concatenated: [request | sub_request]
        "wh": dense(next(keys), (H, nr + ns)),
        "bh": jnp.zeros((nr + ns,), jnp.float32),
    }
    for _ in range(cfg["layers"]):
        params["layers"].append({
            "wqkv": dense(next(keys), (H, 3 * H)),           # fused QKV
            "bqkv": jnp.zeros((3 * H,), jnp.float32),
            "wo": dense(next(keys), (H, H)), "bo": jnp.zeros((H,), jnp.float32),
            "ln1_g": jnp.ones((H,), jnp.float32),
            "ln1_b": jnp.zeros((H,), jnp.float32),
            "w1": dense(next(keys), (H, I)), "b1": jnp.zeros((I,), jnp.float32),
            "w2": dense(next(keys), (I, H)), "b2": jnp.zeros((H,), jnp.float32),
            "ln2_g": jnp.ones((H,), jnp.float32),
            "ln2_b": jnp.zeros((H,), jnp.float32),
        })
    return params


# ----------------------------------------------------------------------------
# Forward (BertModel encoder + pooler + two classification heads)
# ----------------------------------------------------------------------------
def bert_multitask_forward(params, input_ids, attention_mask, cfg):
    B, S = input_ids.shape
    H = cfg["hidden"]
    nH = cfg["num_heads"]
    dH = H // nH
    scale = 1.0 / math.sqrt(dH)

    # --- embeddings: gather (XLA glue) + fused sum+layernorm kernel ---
    we = jnp.take(params["word_emb"], input_ids, axis=0)      # (B, S, H) f32
    pe = params["pos_emb"][:S]                                # (S, H)
    te = params["type_emb"][0:1]                              # (1, H)
    # TODO(synk): token_type_ids hard-coded to segment 0 (HF default call).
    x = embed_layernorm(we, pe, te, params["emb_ln_g"], params["emb_ln_b"])
    x = x.reshape(B * S, H)                                   # bf16 residual stream
    # TODO(synk): nn.Dropout is identity at inference; omitted.

    mask_bias = ((1.0 - attention_mask.astype(jnp.float32)) * -10000.0
                 ).reshape(B, 1, S)

    # --- transformer encoder layers ---
    for layer in params["layers"]:
        # fused QKV projection; output consumed directly by attention
        qkv = fused_linear(x, layer["wqkv"], layer["bqkv"])           # (B*S, 3H) bf16
        ctx = attention(qkv.reshape(B, S, 3 * H), mask_bias,
                        num_heads=nH, scale=scale)                    # (B, S, H) bf16
        # attention output proj + residual + layernorm, one kernel
        x = fused_linear(ctx.reshape(B * S, H), layer["wo"], layer["bo"],
                         residual=x, ln=(layer["ln1_g"], layer["ln1_b"]))
        # FFN: GELU fused into first matmul epilogue; residual+LN into second
        h1 = fused_linear(x, layer["w1"], layer["b1"], activation="gelu")
        x = fused_linear(h1, layer["w2"], layer["b2"],
                         residual=x, ln=(layer["ln2_g"], layer["ln2_b"]))

    # --- pooler (tanh(W*hidden[:,0]+b)) + both heads, one fused kernel ---
    cls = x.reshape(B, S, H)[:, 0, :]                                 # (B, H) bf16
    logits = pooler_and_heads(cls, params["wp"], params["bp"],
                              params["wh"], params["bh"])             # (B, nr+ns)
    nr = cfg["num_request_labels"]
    return logits[:, :nr], logits[:, nr:]


# ----------------------------------------------------------------------------
# Main
# ----------------------------------------------------------------------------
if __name__ == "__main__":
    cfg = dict(
        vocab=100, hidden=32, layers=2, num_heads=4, intermediate=64,
        max_pos=16, num_request_labels=5, num_sub_request_labels=7,
    )
    key = jax.random.PRNGKey(0)
    pkey, dkey = jax.random.split(key)
    params = init_params(pkey, cfg)

    B, S = 2, 8
    input_ids = jax.random.randint(dkey, (B, S), 0, cfg["vocab"], dtype=jnp.int32)
    attention_mask = jnp.ones((B, S), dtype=jnp.int32).at[1, 6:].set(0)  # padding

    fwd = jax.jit(lambda p, ids, m: bert_multitask_forward(p, ids, m, cfg))
    request_logits, sub_request_logits = fwd(params, input_ids, attention_mask)
    jax.block_until_ready((request_logits, sub_request_logits))

    assert request_logits.shape == (B, cfg["num_request_labels"])
    assert sub_request_logits.shape == (B, cfg["num_sub_request_labels"])
    assert bool(jnp.all(jnp.isfinite(request_logits)))
    assert bool(jnp.all(jnp.isfinite(sub_request_logits)))
    print("KERNEL_OK")
</pallas_src>

<mosaic_0001>
module attributes {stable_mosaic.version = 11 : i64} {
  func.func @_fused_linear_kernel(%arg0: i32, %arg1: i32, %arg2: i32, %arg3: memref<16x32xbf16, #tpu.memory_space<vmem>>, %arg4: memref<32x96xbf16, #tpu.memory_space<vmem>>, %arg5: memref<1x96xf32, #tpu.memory_space<vmem>>, %arg6: memref<16x96xbf16, #tpu.memory_space<vmem>>, %arg7: memref<16x96xf32, #tpu.memory_space<vmem>>) attributes {dimension_semantics = [#tpu.dimension_semantics<parallel>, #tpu.dimension_semantics<parallel>, #tpu.dimension_semantics<arbitrary>], iteration_bounds = array<i64: 1, 1, 1>, scalar_prefetch = 0 : i64, scratch_operands = 1 : i64, tpu.core_type = #tpu.core_type<tc>, window_params = [{transform_indices = @transform_0, window_bounds = array<i64: 16, 32>}, {transform_indices = @transform_1, window_bounds = array<i64: 32, 96>}, {transform_indices = @transform_2, window_bounds = array<i64: 1, 96>}, {transform_indices = @transform_3, window_bounds = array<i64: 16, 96>}]} {
    %c0_i32 = arith.constant 0 : i32
    %0 = arith.cmpi eq, %arg2, %c0_i32 : i32
    %1 = arith.extui %0 : i1 to i32
    %c0_i32_0 = arith.constant 0 : i32
    %2 = arith.cmpi ne, %1, %c0_i32_0 : i32
    scf.if %2 {
      %cst_10 = arith.constant 0.000000e+00 : f32
      %12 = vector.broadcast %cst_10 : f32 to vector<16x96xf32>
      %c0_11 = arith.constant 0 : index
      %c0_12 = arith.constant 0 : index
      %13 = vector.load %arg7[%c0_11, %c0_12] : memref<16x96xf32, #tpu.memory_space<vmem>>, vector<16x96xf32>
      tpu.vector_store %arg7[%c0_11, %c0_12], %12 {strides = array<i32>} : memref<16x96xf32, #tpu.memory_space<vmem>>, vector<16x96xf32>,
    } else {
    }
    %c0 = arith.constant 0 : index
    %c0_1 = arith.constant 0 : index
    %3 = vector.load %arg7[%c0, %c0_1] : memref<16x96xf32, #tpu.memory_space<vmem>>, vector<16x96xf32>
    %c0_2 = arith.constant 0 : index
    %c0_3 = arith.constant 0 : index
    %4 = vector.load %arg3[%c0_2, %c0_3] : memref<16x32xbf16, #tpu.memory_space<vmem>>, vector<16x32xbf16>
    %c0_4 = arith.constant 0 : index
    %c0_5 = arith.constant 0 : index
    %5 = vector.load %arg4[%c0_4, %c0_5] : memref<32x96xbf16, #tpu.memory_space<vmem>>, vector<32x96xbf16>
    %cst = arith.constant dense<0.000000e+00> : vector<16x96xf32>
    %6 = tpu.matmul %4, %5, %cst {dimension_numbers = #tpu.dot_dimension_numbers<[1], [0], [0], [1], [0, 0, 1, 1], [], []>} : vector<16x32xbf16>, vector<32x96xbf16>, vector<16x96xf32> -> vector<16x96xf32>
    %7 = arith.addf %3, %6 : vector<16x96xf32>
    %c0_6 = arith.constant 0 : index
    %c0_7 = arith.constant 0 : index
    %8 = vector.load %arg7[%c0_6, %c0_7] : memref<16x96xf32, #tpu.memory_space<vmem>>, vector<16x96xf32>
    tpu.vector_store %arg7[%c0_6, %c0_7], %7 {strides = array<i32>} : memref<16x96xf32, #tpu.memory_space<vmem>>, vector<16x96xf32>,
    %c0_i32_8 = arith.constant 0 : i32
    %9 = arith.cmpi eq, %arg2, %c0_i32_8 : i32
    %10 = arith.extui %9 : i1 to i32
    %c0_i32_9 = arith.constant 0 : i32
    %11 = arith.cmpi ne, %10, %c0_i32_9 : i32
    scf.if %11 {
      %c0_10 = arith.constant 0 : index
      %c0_11 = arith.constant 0 : index
      %12 = vector.load %arg7[%c0_10, %c0_11] : memref<16x96xf32, #tpu.memory_space<vmem>>, vector<16x96xf32>
      %c0_12 = arith.constant 0 : index
      %c0_13 = arith.constant 0 : index
      %13 = vector.load %arg5[%c0_12, %c0_13] : memref<1x96xf32, #tpu.memory_space<vmem>>, vector<1x96xf32>
      %14 = vector.broadcast %13 : vector<1x96xf32> to vector<16x96xf32>
      %15 = arith.addf %12, %14 : vector<16x96xf32>
      %16 = arith.truncf %15 : vector<16x96xf32> to vector<16x96xbf16>
      %c0_14 = arith.constant 0 : index
      %c0_15 = arith.constant 0 : index
      %17 = vector.load %arg6[%c0_14, %c0_15] : memref<16x96xbf16, #tpu.memory_space<vmem>>, vector<16x96xbf16>
      tpu.vector_store %arg6[%c0_14, %c0_15], %16 {strides = array<i32>} : memref<16x96xbf16, #tpu.memory_space<vmem>>, vector<16x96xbf16>,
    } else {
    }
    return
  }
  func.func @transform_0(%arg0: i32, %arg1: i32, %arg2: i32) -> (i32, i32) {
    %c0_i32 = arith.constant 0 : i32
    return %arg0, %arg2 : i32, i32
  }
  func.func @transform_1(%arg0: i32, %arg1: i32, %arg2: i32) -> (i32, i32) {
    %c0_i32 = arith.constant 0 : i32
    return %arg2, %arg1 : i32, i32
  }
  func.func @transform_2(%arg0: i32, %arg1: i32, %arg2: i32) -> (i32, i32) {
    %c0_i32 = arith.constant 0 : i32
    %c0_i32_0 = arith.constant 0 : i32
    return %c0_i32, %arg1 : i32, i32
  }
  func.func @transform_3(%arg0: i32, %arg1: i32, %arg2: i32) -> (i32, i32) {
    %c0_i32 = arith.constant 0 : i32
    return %arg0, %arg1 : i32, i32
  }
}

module attributes {stable_mosaic.version = 11 : i64} {
  func.func @_embed_ln_kernel(%arg0: i32, %arg1: i32, %arg2: memref<1x8x32xf32, #tpu.memory_space<vmem>>, %arg3: memref<8x32xf32, #tpu.memory_space<vmem>>, %arg4: memref<1x32xf32, #tpu.memory_space<vmem>>, %arg5: memref<1x32xf32, #tpu.memory_space<vmem>>, %arg6: memref<1x32xf32, #tpu.memory_space<vmem>>, %arg7: memref<1x8x32xbf16, #tpu.memory_space<vmem>>) attributes {dimension_semantics = [#tpu.dimension_semantics<parallel>, #tpu.dimension_semantics<parallel>], iteration_bounds = array<i64: 2, 1>, scalar_prefetch = 0 : i64, scratch_operands = 0 : i64, tpu.core_type = #tpu.core_type<tc>, window_params = [{transform_indices = @transform_0, window_bounds = array<i64: 1, 8, 32>}, {transform_indices = @transform_1, window_bounds = array<i64: 8, 32>}, {pipeline_mode = #tpu.pipeline_mode<synchronous>, transform_indices = @transform_2, window_bounds = array<i64: 1, 32>}, {pipeline_mode = #tpu.pipeline_mode<synchronous>, transform_indices = @transform_3, window_bounds = array<i64: 1, 32>}, {pipeline_mode = #tpu.pipeline_mode<synchronous>, transform_indices = @transform_4, window_bounds = array<i64: 1, 32>}, {transform_indices = @transform_5, window_bounds = array<i64: 1, 8, 32>}]} {
    %c0 = arith.constant 0 : index
    %c0_0 = arith.constant 0 : index
    %c0_1 = arith.constant 0 : index
    %0 = vector.load %arg2[%c0, %c0_0, %c0_1] : memref<1x8x32xf32, #tpu.memory_space<vmem>>, vector<1x8x32xf32>
    %1 = vector.shape_cast %0 : vector<1x8x32xf32> to vector<8x32xf32>
    %c0_2 = arith.constant 0 : index
    %c0_3 = arith.constant 0 : index
    %2 = vector.load %arg3[%c0_2, %c0_3] : memref<8x32xf32, #tpu.memory_space<vmem>>, vector<8x32xf32>
    %3 = arith.addf %1, %2 : vector<8x32xf32>
    %c0_4 = arith.constant 0 : index
    %c0_5 = arith.constant 0 : index
    %4 = vector.load %arg4[%c0_4, %c0_5] : memref<1x32xf32, #tpu.memory_space<vmem>>, vector<1x32xf32>
    %5 = vector.broadcast %4 : vector<1x32xf32> to vector<8x32xf32>
    %6 = arith.addf %3, %5 : vector<8x32xf32>
    %cst = arith.constant dense<0.000000e+00> : vector<8xf32>
    %7 = vector.multi_reduction <add>, %6, %cst [1] : vector<8x32xf32> to vector<8xf32>
    %8 = vector.shape_cast %7 : vector<8xf32> to vector<8x1xf32>
    %cst_6 = arith.constant 3.200000e+01 : f32
    %9 = vector.broadcast %cst_6 : f32 to vector<8x1xf32>
    %10 = arith.divf %8, %9 : vector<8x1xf32>
    %11 = vector.broadcast %10 : vector<8x1xf32> to vector<8x32xf32>
    %12 = arith.subf %6, %11 : vector<8x32xf32>
    %13 = arith.mulf %12, %12 : vector<8x32xf32>
    %cst_7 = arith.constant dense<0.000000e+00> : vector<8xf32>
    %14 = vector.multi_reduction <add>, %13, %cst_7 [1] : vector<8x32xf32> to vector<8xf32>
    %15 = vector.shape_cast %14 : vector<8xf32> to vector<8x1xf32>
    %cst_8 = arith.constant 3.200000e+01 : f32
    %16 = vector.broadcast %cst_8 : f32 to vector<8x1xf32>
    %17 = arith.divf %15, %16 : vector<8x1xf32>
    %18 = vector.broadcast %10 : vector<8x1xf32> to vector<8x32xf32>
    %19 = arith.subf %6, %18 : vector<8x32xf32>
    %cst_9 = arith.constant 9.99999996E-13 : f32
    %20 = vector.broadcast %cst_9 : f32 to vector<8x1xf32>
    %21 = arith.addf %17, %20 : vector<8x1xf32>
    %22 = math.rsqrt %21 : vector<8x1xf32>
    %23 = vector.broadcast %22 : vector<8x1xf32> to vector<8x32xf32>
    %24 = arith.mulf %19, %23 : vector<8x32xf32>
    %c0_10 = arith.constant 0 : index
    %c0_11 = arith.constant 0 : index
    %25 = vector.load %arg5[%c0_10, %c0_11] : memref<1x32xf32, #tpu.memory_space<vmem>>, vector<1x32xf32>
    %26 = vector.broadcast %25 : vector<1x32xf32> to vector<8x32xf32>
    %27 = arith.mulf %24, %26 : vector<8x32xf32>
    %c0_12 = arith.constant 0 : index
    %c0_13 = arith.constant 0 : index
    %28 = vector.load %arg6[%c0_12, %c0_13] : memref<1x32xf32, #tpu.memory_space<vmem>>, vector<1x32xf32>
    %29 = vector.broadcast %28 : vector<1x32xf32> to vector<8x32xf32>
    %30 = arith.addf %27, %29 : vector<8x32xf32>
    %31 = arith.truncf %30 : vector<8x32xf32> to vector<8x32xbf16>
    %c0_14 = arith.constant 0 : index
    %c0_15 = arith.constant 0 : index
    %c0_16 = arith.constant 0 : index
    %32 = vector.load %arg7[%c0_14, %c0_15, %c0_16] : memref<1x8x32xbf16, #tpu.memory_space<vmem>>, vector<1x8x32xbf16>
    %33 = vector.shape_cast %32 : vector<1x8x32xbf16> to vector<8x32xbf16>
    %34 = vector.shape_cast %31 : vector<8x32xbf16> to vector<1x8x32xbf16>
    tpu.vector_store %arg7[%c0_14, %c0_15, %c0_16], %34 {strides = array<i32>} : memref<1x8x32xbf16, #tpu.memory_space<vmem>>, vector<1x8x32xbf16>,
    return
  }
  func.func @transform_0(%arg0: i32, %arg1: i32) -> (i32, i32, i32) {
    %c0_i32 = arith.constant 0 : i32
    %c0_i32_0 = arith.constant 0 : i32
    return %arg0, %arg1, %c0_i32 : i32, i32, i32
  }
  func.func @transform_1(%arg0: i32, %arg1: i32) -> (i32, i32) {
    %c0_i32 = arith.constant 0 : i32
    %c0_i32_0 = arith.constant 0 : i32
    return %arg1, %c0_i32 : i32, i32
  }
  func.func @transform_2(%arg0: i32, %arg1: i32) -> (i32, i32) {
    %c0_i32 = arith.constant 0 : i32
    %c0_i32_0 = arith.constant 0 : i32
    %c0_i32_1 = arith.constant 0 : i32
    return %c0_i32, %c0_i32_0 : i32, i32
  }
  func.func @transform_3(%arg0: i32, %arg1: i32) -> (i32, i32) {
    %c0_i32 = arith.constant 0 : i32
    %c0_i32_0 = arith.constant 0 : i32
    %c0_i32_1 = arith.constant 0 : i32
    return %c0_i32, %c0_i32_0 : i32, i32
  }
  func.func @transform_4(%arg0: i32, %arg1: i32) -> (i32, i32) {
    %c0_i32 = arith.constant 0 : i32
    %c0_i32_0 = arith.constant 0 : i32
    %c0_i32_1 = arith.constant 0 : i32
    return %c0_i32, %c0_i32_0 : i32, i32
  }
  func.func @transform_5(%arg0: i32, %arg1: i32) -> (i32, i32, i32) {
    %c0_i32 = arith.constant 0 : i32
    %c0_i32_0 = arith.constant 0 : i32
    return %arg0, %arg1, %c0_i32 : i32, i32, i32
  }
}

module attributes {stable_mosaic.version = 11 : i64} {
  func.func @_fused_linear_kernel(%arg0: i32, %arg1: i32, %arg2: i32, %arg3: memref<16x32xbf16, #tpu.memory_space<vmem>>, %arg4: memref<32x32xbf16, #tpu.memory_space<vmem>>, %arg5: memref<1x32xf32, #tpu.memory_space<vmem>>, %arg6: memref<16x32xbf16, #tpu.memory_space<vmem>>, %arg7: memref<1x32xf32, #tpu.memory_space<vmem>>, %arg8: memref<1x32xf32, #tpu.memory_space<vmem>>, %arg9: memref<16x32xbf16, #tpu.memory_space<vmem>>, %arg10: memref<16x32xf32, #tpu.memory_space<vmem>>) attributes {dimension_semantics = [#tpu.dimension_semantics<parallel>, #tpu.dimension_semantics<parallel>, #tpu.dimension_semantics<arbitrary>], iteration_bounds = array<i64: 1, 1, 1>, scalar_prefetch = 0 : i64, scratch_operands = 1 : i64, tpu.core_type = #tpu.core_type<tc>, window_params = [{transform_indices = @transform_0, window_bounds = array<i64: 16, 32>}, {transform_indices = @transform_1, window_bounds = array<i64: 32, 32>}, {transform_indices = @transform_2, window_bounds = array<i64: 1, 32>}, {transform_indices = @transform_3, window_bounds = array<i64: 16, 32>}, {transform_indices = @transform_4, window_bounds = array<i64: 1, 32>}, {transform_indices = @transform_5, window_bounds = array<i64: 1, 32>}, {transform_indices = @transform_6, window_bounds = array<i64: 16, 32>}]} {
    %c0_i32 = arith.constant 0 : i32
    %0 = arith.cmpi eq, %arg2, %c0_i32 : i32
    %1 = arith.extui %0 : i1 to i32
    %c0_i32_0 = arith.constant 0 : i32
    %2 = arith.cmpi ne, %1, %c0_i32_0 : i32
    scf.if %2 {
      %cst_10 = arith.constant 0.000000e+00 : f32
      %12 = vector.broadcast %cst_10 : f32 to vector<16x32xf32>
      %c0_11 = arith.constant 0 : index
      %c0_12 = arith.constant 0 : index
      %13 = vector.load %arg10[%c0_11, %c0_12] : memref<16x32xf32, #tpu.memory_space<vmem>>, vector<16x32xf32>
      tpu.vector_store %arg10[%c0_11, %c0_12], %12 {strides = array<i32>} : memref<16x32xf32, #tpu.memory_space<vmem>>, vector<16x32xf32>,
    } else {
    }
    %c0 = arith.constant 0 : index
    %c0_1 = arith.constant 0 : index
    %3 = vector.load %arg10[%c0, %c0_1] : memref<16x32xf32, #tpu.memory_space<vmem>>, vector<16x32xf32>
    %c0_2 = arith.constant 0 : index
    %c0_3 = arith.constant 0 : index
    %4 = vector.load %arg3[%c0_2, %c0_3] : memref<16x32xbf16, #tpu.memory_space<vmem>>, vector<16x32xbf16>
    %c0_4 = arith.constant 0 : index
    %c0_5 = arith.constant 0 : index
    %5 = vector.load %arg4[%c0_4, %c0_5] : memref<32x32xbf16, #tpu.memory_space<vmem>>, vector<32x32xbf16>
    %cst = arith.constant dense<0.000000e+00> : vector<16x32xf32>
    %6 = tpu.matmul %4, %5, %cst {dimension_numbers = #tpu.dot_dimension_numbers<[1], [0], [0], [1], [0, 0, 1, 1], [], []>} : vector<16x32xbf16>, vector<32x32xbf16>, vector<16x32xf32> -> vector<16x32xf32>
    %7 = arith.addf %3, %6 : vector<16x32xf32>
    %c0_6 = arith.constant 0 : index
    %c0_7 = arith.constant 0 : index
    %8 = vector.load %arg10[%c0_6, %c0_7] : memref<16x32xf32, #tpu.memory_space<vmem>>, vector<16x32xf32>
    tpu.vector_store %arg10[%c0_6, %c0_7], %7 {strides = array<i32>} : memref<16x32xf32, #tpu.memory_space<vmem>>, vector<16x32xf32>,
    %c0_i32_8 = arith.constant 0 : i32
    %9 = arith.cmpi eq, %arg2, %c0_i32_8 : i32
    %10 = arith.extui %9 : i1 to i32
    %c0_i32_9 = arith.constant 0 : i32
    %11 = arith.cmpi ne, %10, %c0_i32_9 : i32
    scf.if %11 {
      %c0_10 = arith.constant 0 : index
      %c0_11 = arith.constant 0 : index
      %12 = vector.load %arg10[%c0_10, %c0_11] : memref<16x32xf32, #tpu.memory_space<vmem>>, vector<16x32xf32>
      %c0_12 = arith.constant 0 : index
      %c0_13 = arith.constant 0 : index
      %13 = vector.load %arg5[%c0_12, %c0_13] : memref<1x32xf32, #tpu.memory_space<vmem>>, vector<1x32xf32>
      %14 = vector.broadcast %13 : vector<1x32xf32> to vector<16x32xf32>
      %15 = arith.addf %12, %14 : vector<16x32xf32>
      %c0_14 = arith.constant 0 : index
      %c0_15 = arith.constant 0 : index
      %16 = vector.load %arg6[%c0_14, %c0_15] : memref<16x32xbf16, #tpu.memory_space<vmem>>, vector<16x32xbf16>
      %17 = arith.extf %16 : vector<16x32xbf16> to vector<16x32xf32>
      %18 = arith.addf %15, %17 : vector<16x32xf32>
      %cst_16 = arith.constant dense<0.000000e+00> : vector<16xf32>
      %19 = vector.multi_reduction <add>, %18, %cst_16 [1] : vector<16x32xf32> to vector<16xf32>
      %20 = vector.shape_cast %19 : vector<16xf32> to vector<16x1xf32>
      %cst_17 = arith.constant 3.200000e+01 : f32
      %21 = vector.broadcast %cst_17 : f32 to vector<16x1xf32>
      %22 = arith.divf %20, %21 : vector<16x1xf32>
      %23 = vector.broadcast %22 : vector<16x1xf32> to vector<16x32xf32>
      %24 = arith.subf %18, %23 : vector<16x32xf32>
      %25 = arith.mulf %24, %24 : vector<16x32xf32>
      %cst_18 = arith.constant dense<0.000000e+00> : vector<16xf32>
      %26 = vector.multi_reduction <add>, %25, %cst_18 [1] : vector<16x32xf32> to vector<16xf32>
      %27 = vector.shape_cast %26 : vector<16xf32> to vector<16x1xf32>
      %cst_19 = arith.constant 3.200000e+01 : f32
      %28 = vector.broadcast %cst_19 : f32 to vector<16x1xf32>
      %29 = arith.divf %27, %28 : vector<16x1xf32>
      %30 = vector.broadcast %22 : vector<16x1xf32> to vector<16x32xf32>
      %31 = arith.subf %18, %30 : vector<16x32xf32>
      %cst_20 = arith.constant 9.99999996E-13 : f32
      %32 = vector.broadcast %cst_20 : f32 to vector<16x1xf32>
      %33 = arith.addf %29, %32 : vector<16x1xf32>
      %34 = math.rsqrt %33 : vector<16x1xf32>
      %35 = vector.broadcast %34 : vector<16x1xf32> to vector<16x32xf32>
      %36 = arith.mulf %31, %35 : vector<16x32xf32>
      %c0_21 = arith.constant 0 : index
      %c0_22 = arith.constant 0 : index
      %37 = vector.load %arg7[%c0_21, %c0_22] : memref<1x32xf32, #tpu.memory_space<vmem>>, vector<1x32xf32>
      %38 = vector.broadcast %37 : vector<1x32xf32> to vector<16x32xf32>
      %39 = arith.mulf %36, %38 : vector<16x32xf32>
      %c0_23 = arith.constant 0 : index
      %c0_24 = arith.constant 0 : index
      %40 = vector.load %arg8[%c0_23, %c0_24] : memref<1x32xf32, #tpu.memory_space<vmem>>, vector<1x32xf32>
      %41 = vector.broadcast %40 : vector<1x32xf32> to vector<16x32xf32>
      %42 = arith.addf %39, %41 : vector<16x32xf32>
      %43 = arith.truncf %42 : vector<16x32xf32> to vector<16x32xbf16>
      %c0_25 = arith.constant 0 : index
      %c0_26 = arith.constant 0 : index
      %44 = vector.load %arg9[%c0_25, %c0_26] : memref<16x32xbf16, #tpu.memory_space<vmem>>, vector<16x32xbf16>
      tpu.vector_store %arg9[%c0_25, %c0_26], %43 {strides = array<i32>} : memref<16x32xbf16, #tpu.memory_space<vmem>>, vector<16x32xbf16>,
    } else {
    }
    return
  }
  func.func @transform_0(%arg0: i32, %arg1: i32, %arg2: i32) -> (i32, i32) {
    %c0_i32 = arith.constant 0 : i32
    return %arg0, %arg2 : i32, i32
  }
  func.func @transform_1(%arg0: i32, %arg1: i32, %arg2: i32) -> (i32, i32) {
    %c0_i32 = arith.constant 0 : i32
    return %arg2, %arg1 : i32, i32
  }
  func.func @transform_2(%arg0: i32, %arg1: i32, %arg2: i32) -> (i32, i32) {
    %c0_i32 = arith.constant 0 : i32
    %c0_i32_0 = arith.constant 0 : i32
    return %c0_i32, %arg1 : i32, i32
  }
  func.func @transform_3(%arg0: i32, %arg1: i32, %arg2: i32) -> (i32, i32) {
    %c0_i32 = arith.constant 0 : i32
    return %arg0, %arg1 : i32, i32
  }
  func.func @transform_4(%arg0: i32, %arg1: i32, %arg2: i32) -> (i32, i32) {
    %c0_i32 = arith.constant 0 : i32
    %c0_i32_0 = arith.constant 0 : i32
    return %c0_i32, %arg1 : i32, i32
  }
  func.func @transform_5(%arg0: i32, %arg1: i32, %arg2: i32) -> (i32, i32) {
    %c0_i32 = arith.constant 0 : i32
    %c0_i32_0 = arith.constant 0 : i32
    return %c0_i32, %arg1 : i32, i32
  }
  func.func @transform_6(%arg0: i32, %arg1: i32, %arg2: i32) -> (i32, i32) {
    %c0_i32 = arith.constant 0 : i32
    return %arg0, %arg1 : i32, i32
  }
}

module attributes {stable_mosaic.version = 11 : i64} {
  func.func @_attention_kernel(%arg0: i32, %arg1: i32, %arg2: memref<1x8x96xbf16, #tpu.memory_space<vmem>>, %arg3: memref<1x1x8xf32, #tpu.memory_space<vmem>>, %arg4: memref<1x8x32xbf16, #tpu.memory_space<vmem>>) attributes {dimension_semantics = [#tpu.dimension_semantics<parallel>, #tpu.dimension_semantics<arbitrary>], iteration_bounds = array<i64: 2, 1>, scalar_prefetch = 0 : i64, scratch_operands = 0 : i64, tpu.core_type = #tpu.core_type<tc>, window_params = [{transform_indices = @transform_0, window_bounds = array<i64: 1, 8, 96>}, {transform_indices = @transform_1, window_bounds = array<i64: 1, 1, 8>}, {transform_indices = @transform_2, window_bounds = array<i64: 1, 8, 32>}]} {
    %c8_i32 = arith.constant 8 : i32
    %0 = arith.muli %arg1, %c8_i32 : i32
    %1 = tpu.assume_multiple %0, 8 : i32
    %c0 = arith.constant 0 : index
    %c0_0 = arith.constant 0 : index
    %c0_1 = arith.constant 0 : index
    %2 = vector.load %arg3[%c0, %c0_0, %c0_1] : memref<1x1x8xf32, #tpu.memory_space<vmem>>, vector<1x1x8xf32>
    %3 = vector.shape_cast %2 : vector<1x1x8xf32> to vector<1x8xf32>
    %c0_2 = arith.constant 0 : index
    %4 = arith.index_cast %1 : i32 to index
    %c0_3 = arith.constant 0 : index
    %5 = vector.load %arg2[%c0_2, %4, %c0_3] : memref<1x8x96xbf16, #tpu.memory_space<vmem>>, vector<1x8x8xbf16>
    %6 = vector.shape_cast %5 : vector<1x8x8xbf16> to vector<8x8xbf16>
    %c0_4 = arith.constant 0 : index
    %c0_5 = arith.constant 0 : index
    %c32 = arith.constant 32 : index
    %7 = vector.load %arg2[%c0_4, %c0_5, %c32] : memref<1x8x96xbf16, #tpu.memory_space<vmem>>, vector<1x8x8xbf16>
    %8 = vector.shape_cast %7 : vector<1x8x8xbf16> to vector<8x8xbf16>
    %c0_6 = arith.constant 0 : index
    %c0_7 = arith.constant 0 : index
    %c64 = arith.constant 64 : index
    %9 = vector.load %arg2[%c0_6, %c0_7, %c64] : memref<1x8x96xbf16, #tpu.memory_space<vmem>>, vector<1x8x8xbf16>
    %10 = vector.shape_cast %9 : vector<1x8x8xbf16> to vector<8x8xbf16>
    %cst = arith.constant dense<0.000000e+00> : vector<8x8xf32>
    %11 = tpu.matmul %6, %8, %cst {dimension_numbers = #tpu.dot_dimension_numbers<[1], [1], [0], [0], [0, 0, 1, 0], [], []>} : vector<8x8xbf16>, vector<8x8xbf16>, vector<8x8xf32> -> vector<8x8xf32>
    %cst_8 = arith.constant 0.353553385 : f32
    %12 = vector.broadcast %cst_8 : f32 to vector<8x8xf32>
    %13 = arith.mulf %11, %12 : vector<8x8xf32>
    %14 = vector.broadcast %3 : vector<1x8xf32> to vector<8x8xf32>
    %15 = arith.addf %13, %14 : vector<8x8xf32>
    %cst_9 = arith.constant dense<0xFF800000> : vector<8xf32>
    %16 = vector.multi_reduction <maximumf>, %15, %cst_9 [1] : vector<8x8xf32> to vector<8xf32>
    %17 = vector.shape_cast %16 : vector<8xf32> to vector<8x1xf32>
    %18 = vector.broadcast %17 : vector<8x1xf32> to vector<8x8xf32>
    %19 = arith.subf %15, %18 : vector<8x8xf32>
    %20 = math.exp %19 : vector<8x8xf32>
    %cst_10 = arith.constant dense<0.000000e+00> : vector<8xf32>
    %21 = vector.multi_reduction <add>, %20, %cst_10 [1] : vector<8x8xf32> to vector<8xf32>
    %22 = vector.shape_cast %21 : vector<8xf32> to vector<8x1xf32>
    %23 = tpu.reciprocal %22 {approx = true} : vector<8x1xf32> -> vector<8x1xf32>
    %24 = vector.broadcast %23 : vector<8x1xf32> to vector<8x8xf32>
    %25 = arith.mulf %20, %24 : vector<8x8xf32>
    %26 = arith.truncf %25 : vector<8x8xf32> to vector<8x8xbf16>
    %cst_11 = arith.constant dense<0.000000e+00> : vector<8x8xf32>
    %27 = tpu.matmul %26, %10, %cst_11 {dimension_numbers = #tpu.dot_dimension_numbers<[1], [0], [0], [1], [0, 0, 1, 1], [], []>} : vector<8x8xbf16>, vector<8x8xbf16>, vector<8x8xf32> -> vector<8x8xf32>
    %28 = arith.truncf %27 : vector<8x8xf32> to vector<8x8xbf16>
    %c0_12 = arith.constant 0 : index
    %c0_13 = arith.constant 0 : index
    %c0_14 = arith.constant 0 : index
    %29 = vector.load %arg4[%c0_12, %c0_13, %c0_14] : memref<1x8x32xbf16, #tpu.memory_space<vmem>>, vector<1x8x8xbf16>
    %30 = vector.shape_cast %29 : vector<1x8x8xbf16> to vector<8x8xbf16>
    %31 = vector.shape_cast %28 : vector<8x8xbf16> to vector<1x8x8xbf16>
    tpu.vector_store %arg4[%c0_12, %c0_13, %c0_14], %31 {strides = array<i32>} : memref<1x8x32xbf16, #tpu.memory_space<vmem>>, vector<1x8x8xbf16>,
    %c0_15 = arith.constant 0 : index
    %32 = arith.index_cast %1 : i32 to index
    %c8 = arith.constant 8 : index
    %33 = vector.load %arg2[%c0_15, %32, %c8] : memref<1x8x96xbf16, #tpu.memory_space<vmem>>, vector<1x8x8xbf16>
    %34 = vector.shape_cast %33 : vector<1x8x8xbf16> to vector<8x8xbf16>
    %c0_16 = arith.constant 0 : index
    %c0_17 = arith.constant 0 : index
    %c40 = arith.constant 40 : index
    %35 = vector.load %arg2[%c0_16, %c0_17, %c40] : memref<1x8x96xbf16, #tpu.memory_space<vmem>>, vector<1x8x8xbf16>
    %36 = vector.shape_cast %35 : vector<1x8x8xbf16> to vector<8x8xbf16>
    %c0_18 = arith.constant 0 : index
    %c0_19 = arith.constant 0 : index
    %c72 = arith.constant 72 : index
    %37 = vector.load %arg2[%c0_18, %c0_19, %c72] : memref<1x8x96xbf16, #tpu.memory_space<vmem>>, vector<1x8x8xbf16>
    %38 = vector.shape_cast %37 : vector<1x8x8xbf16> to vector<8x8xbf16>
    %cst_20 = arith.constant dense<0.000000e+00> : vector<8x8xf32>
    %39 = tpu.matmul %34, %36, %cst_20 {dimension_numbers = #tpu.dot_dimension_numbers<[1], [1], [0], [0], [0, 0, 1, 0], [], []>} : vector<8x8xbf16>, vector<8x8xbf16>, vector<8x8xf32> -> vector<8x8xf32>
    %cst_21 = arith.constant 0.353553385 : f32
    %40 = vector.broadcast %cst_21 : f32 to vector<8x8xf32>
    %41 = arith.mulf %39, %40 : vector<8x8xf32>
    %42 = vector.broadcast %3 : vector<1x8xf32> to vector<8x8xf32>
    %43 = arith.addf %41, %42 : vector<8x8xf32>
    %cst_22 = arith.constant dense<0xFF800000> : vector<8xf32>
    %44 = vector.multi_reduction <maximumf>, %43, %cst_22 [1] : vector<8x8xf32> to vector<8xf32>
    %45 = vector.shape_cast %44 : vector<8xf32> to vector<8x1xf32>
    %46 = vector.broadcast %45 : vector<8x1xf32> to vector<8x8xf32>
    %47 = arith.subf %43, %46 : vector<8x8xf32>
    %48 = math.exp %47 : vector<8x8xf32>
    %cst_23 = arith.constant dense<0.000000e+00> : vector<8xf32>
    %49 = vector.multi_reduction <add>, %48, %cst_23 [1] : vector<8x8xf32> to vector<8xf32>
    %50 = vector.shape_cast %49 : vector<8xf32> to vector<8x1xf32>
    %51 = tpu.reciprocal %50 {approx = true} : vector<8x1xf32> -> vector<8x1xf32>
    %52 = vector.broadcast %51 : vector<8x1xf32> to vector<8x8xf32>
    %53 = arith.mulf %48, %52 : vector<8x8xf32>
    %54 = arith.truncf %53 : vector<8x8xf32> to vector<8x8xbf16>
    %cst_24 = arith.constant dense<0.000000e+00> : vector<8x8xf32>
    %55 = tpu.matmul %54, %38, %cst_24 {dimension_numbers = #tpu.dot_dimension_numbers<[1], [0], [0], [1], [0, 0, 1, 1], [], []>} : vector<8x8xbf16>, vector<8x8xbf16>, vector<8x8xf32> -> vector<8x8xf32>
    %56 = arith.truncf %55 : vector<8x8xf32> to vector<8x8xbf16>
    %c0_25 = arith.constant 0 : index
    %c0_26 = arith.constant 0 : index
    %c8_27 = arith.constant 8 : index
    %57 = vector.load %arg4[%c0_25, %c0_26, %c8_27] : memref<1x8x32xbf16, #tpu.memory_space<vmem>>, vector<1x8x8xbf16>
    %58 = vector.shape_cast %57 : vector<1x8x8xbf16> to vector<8x8xbf16>
    %59 = vector.shape_cast %56 : vector<8x8xbf16> to vector<1x8x8xbf16>
    tpu.vector_store %arg4[%c0_25, %c0_26, %c8_27], %59 {strides = array<i32>} : memref<1x8x32xbf16, #tpu.memory_space<vmem>>, vector<1x8x8xbf16>,
    %c0_28 = arith.constant 0 : index
    %60 = arith.index_cast %1 : i32 to index
    %c16 = arith.constant 16 : index
    %61 = vector.load %arg2[%c0_28, %60, %c16] : memref<1x8x96xbf16, #tpu.memory_space<vmem>>, vector<1x8x8xbf16>
    %62 = vector.shape_cast %61 : vector<1x8x8xbf16> to vector<8x8xbf16>
    %c0_29 = arith.constant 0 : index
    %c0_30 = arith.constant 0 : index
    %c48 = arith.constant 48 : index
    %63 = vector.load %arg2[%c0_29, %c0_30, %c48] : memref<1x8x96xbf16, #tpu.memory_space<vmem>>, vector<1x8x8xbf16>
    %64 = vector.shape_cast %63 : vector<1x8x8xbf16> to vector<8x8xbf16>
    %c0_31 = arith.constant 0 : index
    %c0_32 = arith.constant 0 : index
    %c80 = arith.constant 80 : index
    %65 = vector.load %arg2[%c0_31, %c0_32, %c80] : memref<1x8x96xbf16, #tpu.memory_space<vmem>>, vector<1x8x8xbf16>
    %66 = vector.shape_cast %65 : vector<1x8x8xbf16> to vector<8x8xbf16>
    %cst_33 = arith.constant dense<0.000000e+00> : vector<8x8xf32>
    %67 = tpu.matmul %62, %64, %cst_33 {dimension_numbers = #tpu.dot_dimension_numbers<[1], [1], [0], [0], [0, 0, 1, 0], [], []>} : vector<8x8xbf16>, vector<8x8xbf16>, vector<8x8xf32> -> vector<8x8xf32>
    %cst_34 = arith.constant 0.353553385 : f32
    %68 = vector.broadcast %cst_34 : f32 to vector<8x8xf32>
    %69 = arith.mulf %67, %68 : vector<8x8xf32>
    %70 = vector.broadcast %3 : vector<1x8xf32> to vector<8x8xf32>
    %71 = arith.addf %69, %70 : vector<8x8xf32>
    %cst_35 = arith.constant dense<0xFF800000> : vector<8xf32>
    %72 = vector.multi_reduction <maximumf>, %71, %cst_35 [1] : vector<8x8xf32> to vector<8xf32>
    %73 = vector.shape_cast %72 : vector<8xf32> to vector<8x1xf32>
    %74 = vector.broadcast %73 : vector<8x1xf32> to vector<8x8xf32>
    %75 = arith.subf %71, %74 : vector<8x8xf32>
    %76 = math.exp %75 : vector<8x8xf32>
    %cst_36 = arith.constant dense<0.000000e+00> : vector<8xf32>
    %77 = vector.multi_reduction <add>, %76, %cst_36 [1] : vector<8x8xf32> to vector<8xf32>
    %78 = vector.shape_cast %77 : vector<8xf32> to vector<8x1xf32>
    %79 = tpu.reciprocal %78 {approx = true} : vector<8x1xf32> -> vector<8x1xf32>
    %80 = vector.broadcast %79 : vector<8x1xf32> to vector<8x8xf32>
    %81 = arith.mulf %76, %80 : vector<8x8xf32>
    %82 = arith.truncf %81 : vector<8x8xf32> to vector<8x8xbf16>
    %cst_37 = arith.constant dense<0.000000e+00> : vector<8x8xf32>
    %83 = tpu.matmul %82, %66, %cst_37 {dimension_numbers = #tpu.dot_dimension_numbers<[1], [0], [0], [1], [0, 0, 1, 1], [], []>} : vector<8x8xbf16>, vector<8x8xbf16>, vector<8x8xf32> -> vector<8x8xf32>
    %84 = arith.truncf %83 : vector<8x8xf32> to vector<8x8xbf16>
    %c0_38 = arith.constant 0 : index
    %c0_39 = arith.constant 0 : index
    %c16_40 = arith.constant 16 : index
    %85 = vector.load %arg4[%c0_38, %c0_39, %c16_40] : memref<1x8x32xbf16, #tpu.memory_space<vmem>>, vector<1x8x8xbf16>
    %86 = vector.shape_cast %85 : vector<1x8x8xbf16> to vector<8x8xbf16>
    %87 = vector.shape_cast %84 : vector<8x8xbf16> to vector<1x8x8xbf16>
    tpu.vector_store %arg4[%c0_38, %c0_39, %c16_40], %87 {strides = array<i32>} : memref<1x8x32xbf16, #tpu.memory_space<vmem>>, vector<1x8x8xbf16>,
    %c0_41 = arith.constant 0 : index
    %88 = arith.index_cast %1 : i32 to index
    %c24 = arith.constant 24 : index
    %89 = vector.load %arg2[%c0_41, %88, %c24] : memref<1x8x96xbf16, #tpu.memory_space<vmem>>, vector<1x8x8xbf16>
    %90 = vector.shape_cast %89 : vector<1x8x8xbf16> to vector<8x8xbf16>
    %c0_42 = arith.constant 0 : index
    %c0_43 = arith.constant 0 : index
    %c56 = arith.constant 56 : index
    %91 = vector.load %arg2[%c0_42, %c0_43, %c56] : memref<1x8x96xbf16, #tpu.memory_space<vmem>>, vector<1x8x8xbf16>
    %92 = vector.shape_cast %91 : vector<1x8x8xbf16> to vector<8x8xbf16>
    %c0_44 = arith.constant 0 : index
    %c0_45 = arith.constant 0 : index
    %c88 = arith.constant 88 : index
    %93 = vector.load %arg2[%c0_44, %c0_45, %c88] : memref<1x8x96xbf16, #tpu.memory_space<vmem>>, vector<1x8x8xbf16>
    %94 = vector.shape_cast %93 : vector<1x8x8xbf16> to vector<8x8xbf16>
    %cst_46 = arith.constant dense<0.000000e+00> : vector<8x8xf32>
    %95 = tpu.matmul %90, %92, %cst_46 {dimension_numbers = #tpu.dot_dimension_numbers<[1], [1], [0], [0], [0, 0, 1, 0], [], []>} : vector<8x8xbf16>, vector<8x8xbf16>, vector<8x8xf32> -> vector<8x8xf32>
    %cst_47 = arith.constant 0.353553385 : f32
    %96 = vector.broadcast %cst_47 : f32 to vector<8x8xf32>
    %97 = arith.mulf %95, %96 : vector<8x8xf32>
    %98 = vector.broadcast %3 : vector<1x8xf32> to vector<8x8xf32>
    %99 = arith.addf %97, %98 : vector<8x8xf32>
    %cst_48 = arith.constant dense<0xFF800000> : vector<8xf32>
    %100 = vector.multi_reduction <maximumf>, %99, %cst_48 [1] : vector<8x8xf32> to vector<8xf32>
    %101 = vector.shape_cast %100 : vector<8xf32> to vector<8x1xf32>
    %102 = vector.broadcast %101 : vector<8x1xf32> to vector<8x8xf32>
    %103 = arith.subf %99, %102 : vector<8x8xf32>
    %104 = math.exp %103 : vector<8x8xf32>
    %cst_49 = arith.constant dense<0.000000e+00> : vector<8xf32>
    %105 = vector.multi_reduction <add>, %104, %cst_49 [1] : vector<8x8xf32> to vector<8xf32>
    %106 = vector.shape_cast %105 : vector<8xf32> to vector<8x1xf32>
    %107 = tpu.reciprocal %106 {approx = true} : vector<8x1xf32> -> vector<8x1xf32>
    %108 = vector.broadcast %107 : vector<8x1xf32> to vector<8x8xf32>
    %109 = arith.mulf %104, %108 : vector<8x8xf32>
    %110 = arith.truncf %109 : vector<8x8xf32> to vector<8x8xbf16>
    %cst_50 = arith.constant dense<0.000000e+00> : vector<8x8xf32>
    %111 = tpu.matmul %110, %94, %cst_50 {dimension_numbers = #tpu.dot_dimension_numbers<[1], [0], [0], [1], [0, 0, 1, 1], [], []>} : vector<8x8xbf16>, vector<8x8xbf16>, vector<8x8xf32> -> vector<8x8xf32>
    %112 = arith.truncf %111 : vector<8x8xf32> to vector<8x8xbf16>
    %c0_51 = arith.constant 0 : index
    %c0_52 = arith.constant 0 : index
    %c24_53 = arith.constant 24 : index
    %113 = vector.load %arg4[%c0_51, %c0_52, %c24_53] : memref<1x8x32xbf16, #tpu.memory_space<vmem>>, vector<1x8x8xbf16>
    %114 = vector.shape_cast %113 : vector<1x8x8xbf16> to vector<8x8xbf16>
    %115 = vector.shape_cast %112 : vector<8x8xbf16> to vector<1x8x8xbf16>
    tpu.vector_store %arg4[%c0_51, %c0_52, %c24_53], %115 {strides = array<i32>} : memref<1x8x32xbf16, #tpu.memory_space<vmem>>, vector<1x8x8xbf16>,
    return
  }
  func.func @transform_0(%arg0: i32, %arg1: i32) -> (i32, i32, i32) {
    %c0_i32 = arith.constant 0 : i32
    %c0_i32_0 = arith.constant 0 : i32
    %c0_i32_1 = arith.constant 0 : i32
    return %arg0, %c0_i32, %c0_i32_0 : i32, i32, i32
  }
  func.func @transform_1(%arg0: i32, %arg1: i32) -> (i32, i32, i32) {
    %c0_i32 = arith.constant 0 : i32
    %c0_i32_0 = arith.constant 0 : i32
    %c0_i32_1 = arith.constant 0 : i32
    return %arg0, %c0_i32, %c0_i32_0 : i32, i32, i32
  }
  func.func @transform_2(%arg0: i32, %arg1: i32) -> (i32, i32, i32) {
    %c0_i32 = arith.constant 0 : i32
    %c0_i32_0 = arith.constant 0 : i32
    return %arg0, %arg1, %c0_i32 : i32, i32, i32
  }
}

module attributes {stable_mosaic.version = 11 : i64} {
  func.func @_fused_linear_kernel(%arg0: i32, %arg1: i32, %arg2: i32, %arg3: memref<16x32xbf16, #tpu.memory_space<vmem>>, %arg4: memref<32x64xbf16, #tpu.memory_space<vmem>>, %arg5: memref<1x64xf32, #tpu.memory_space<vmem>>, %arg6: memref<16x64xbf16, #tpu.memory_space<vmem>>, %arg7: memref<16x64xf32, #tpu.memory_space<vmem>>) attributes {dimension_semantics = [#tpu.dimension_semantics<parallel>, #tpu.dimension_semantics<parallel>, #tpu.dimension_semantics<arbitrary>], iteration_bounds = array<i64: 1, 1, 1>, scalar_prefetch = 0 : i64, scratch_operands = 1 : i64, tpu.core_type = #tpu.core_type<tc>, window_params = [{transform_indices = @transform_0, window_bounds = array<i64: 16, 32>}, {transform_indices = @transform_1, window_bounds = array<i64: 32, 64>}, {transform_indices = @transform_2, window_bounds = array<i64: 1, 64>}, {transform_indices = @transform_3, window_bounds = array<i64: 16, 64>}]} {
    %c0_i32 = arith.constant 0 : i32
    %0 = arith.cmpi eq, %arg2, %c0_i32 : i32
    %1 = arith.extui %0 : i1 to i32
    %c0_i32_0 = arith.constant 0 : i32
    %2 = arith.cmpi ne, %1, %c0_i32_0 : i32
    scf.if %2 {
      %cst_10 = arith.constant 0.000000e+00 : f32
      %12 = vector.broadcast %cst_10 : f32 to vector<16x64xf32>
      %c0_11 = arith.constant 0 : index
      %c0_12 = arith.constant 0 : index
      %13 = vector.load %arg7[%c0_11, %c0_12] : memref<16x64xf32, #tpu.memory_space<vmem>>, vector<16x64xf32>
      tpu.vector_store %arg7[%c0_11, %c0_12], %12 {strides = array<i32>} : memref<16x64xf32, #tpu.memory_space<vmem>>, vector<16x64xf32>,
    } else {
    }
    %c0 = arith.constant 0 : index
    %c0_1 = arith.constant 0 : index
    %3 = vector.load %arg7[%c0, %c0_1] : memref<16x64xf32, #tpu.memory_space<vmem>>, vector<16x64xf32>
    %c0_2 = arith.constant 0 : index
    %c0_3 = arith.constant 0 : index
    %4 = vector.load %arg3[%c0_2, %c0_3] : memref<16x32xbf16, #tpu.memory_space<vmem>>, vector<16x32xbf16>
    %c0_4 = arith.constant 0 : index
    %c0_5 = arith.constant 0 : index
    %5 = vector.load %arg4[%c0_4, %c0_5] : memref<32x64xbf16, #tpu.memory_space<vmem>>, vector<32x64xbf16>
    %cst = arith.constant dense<0.000000e+00> : vector<16x64xf32>
    %6 = tpu.matmul %4, %5, %cst {dimension_numbers = #tpu.dot_dimension_numbers<[1], [0], [0], [1], [0, 0, 1, 1], [], []>} : vector<16x32xbf16>, vector<32x64xbf16>, vector<16x64xf32> -> vector<16x64xf32>
    %7 = arith.addf %3, %6 : vector<16x64xf32>
    %c0_6 = arith.constant 0 : index
    %c0_7 = arith.constant 0 : index
    %8 = vector.load %arg7[%c0_6, %c0_7] : memref<16x64xf32, #tpu.memory_space<vmem>>, vector<16x64xf32>
    tpu.vector_store %arg7[%c0_6, %c0_7], %7 {strides = array<i32>} : memref<16x64xf32, #tpu.memory_space<vmem>>, vector<16x64xf32>,
    %c0_i32_8 = arith.constant 0 : i32
    %9 = arith.cmpi eq, %arg2, %c0_i32_8 : i32
    %10 = arith.extui %9 : i1 to i32
    %c0_i32_9 = arith.constant 0 : i32
    %11 = arith.cmpi ne, %10, %c0_i32_9 : i32
    scf.if %11 {
      %c0_10 = arith.constant 0 : index
      %c0_11 = arith.constant 0 : index
      %12 = vector.load %arg7[%c0_10, %c0_11] : memref<16x64xf32, #tpu.memory_space<vmem>>, vector<16x64xf32>
      %c0_12 = arith.constant 0 : index
      %c0_13 = arith.constant 0 : index
      %13 = vector.load %arg5[%c0_12, %c0_13] : memref<1x64xf32, #tpu.memory_space<vmem>>, vector<1x64xf32>
      %14 = vector.broadcast %13 : vector<1x64xf32> to vector<16x64xf32>
      %15 = arith.addf %12, %14 : vector<16x64xf32>
      %cst_14 = arith.constant 5.000000e-01 : f32
      %16 = vector.broadcast %cst_14 : f32 to vector<16x64xf32>
      %17 = arith.mulf %16, %15 : vector<16x64xf32>
      %cst_15 = arith.constant 4.471500e-02 : f32
      %18 = vector.broadcast %cst_15 : f32 to vector<16x64xf32>
      %19 = arith.mulf %18, %15 : vector<16x64xf32>
      %20 = arith.mulf %19, %15 : vector<16x64xf32>
      %21 = arith.mulf %20, %15 : vector<16x64xf32>
      %22 = arith.addf %15, %21 : vector<16x64xf32>
      %cst_16 = arith.constant 0.797884583 : f32
      %23 = vector.broadcast %cst_16 : f32 to vector<16x64xf32>
      %24 = arith.mulf %23, %22 : vector<16x64xf32>
      %25 = math.tanh %24 : vector<16x64xf32>
      %cst_17 = arith.constant 1.000000e+00 : f32
      %26 = vector.broadcast %cst_17 : f32 to vector<16x64xf32>
      %27 = arith.addf %26, %25 : vector<16x64xf32>
      %28 = arith.mulf %17, %27 : vector<16x64xf32>
      %29 = arith.truncf %28 : vector<16x64xf32> to vector<16x64xbf16>
      %c0_18 = arith.constant 0 : index
      %c0_19 = arith.constant 0 : index
      %30 = vector.load %arg6[%c0_18, %c0_19] : memref<16x64xbf16, #tpu.memory_space<vmem>>, vector<16x64xbf16>
      tpu.vector_store %arg6[%c0_18, %c0_19], %29 {strides = array<i32>} : memref<16x64xbf16, #tpu.memory_space<vmem>>, vector<16x64xbf16>,
    } else {
    }
    return
  }
  func.func @transform_0(%arg0: i32, %arg1: i32, %arg2: i32) -> (i32, i32) {
    %c0_i32 = arith.constant 0 : i32
    return %arg0, %arg2 : i32, i32
  }
  func.func @transform_1(%arg0: i32, %arg1: i32, %arg2: i32) -> (i32, i32) {
    %c0_i32 = arith.constant 0 : i32
    return %arg2, %arg1 : i32, i32
  }
  func.func @transform_2(%arg0: i32, %arg1: i32, %arg2: i32) -> (i32, i32) {
    %c0_i32 = arith.constant 0 : i32
    %c0_i32_0 = arith.constant 0 : i32
    return %c0_i32, %arg1 : i32, i32
  }
  func.func @transform_3(%arg0: i32, %arg1: i32, %arg2: i32) -> (i32, i32) {
    %c0_i32 = arith.constant 0 : i32
    return %arg0, %arg1 : i32, i32
  }
}

module attributes {stable_mosaic.version = 11 : i64} {
  func.func @_fused_linear_kernel(%arg0: i32, %arg1: i32, %arg2: i32, %arg3: memref<16x64xbf16, #tpu.memory_space<vmem>>, %arg4: memref<64x32xbf16, #tpu.memory_space<vmem>>, %arg5: memref<1x32xf32, #tpu.memory_space<vmem>>, %arg6: memref<16x32xbf16, #tpu.memory_space<vmem>>, %arg7: memref<1x32xf32, #tpu.memory_space<vmem>>, %arg8: memref<1x32xf32, #tpu.memory_space<vmem>>, %arg9: memref<16x32xbf16, #tpu.memory_space<vmem>>, %arg10: memref<16x32xf32, #tpu.memory_space<vmem>>) attributes {dimension_semantics = [#tpu.dimension_semantics<parallel>, #tpu.dimension_semantics<parallel>, #tpu.dimension_semantics<arbitrary>], iteration_bounds = array<i64: 1, 1, 1>, scalar_prefetch = 0 : i64, scratch_operands = 1 : i64, tpu.core_type = #tpu.core_type<tc>, window_params = [{transform_indices = @transform_0, window_bounds = array<i64: 16, 64>}, {transform_indices = @transform_1, window_bounds = array<i64: 64, 32>}, {transform_indices = @transform_2, window_bounds = array<i64: 1, 32>}, {transform_indices = @transform_3, window_bounds = array<i64: 16, 32>}, {transform_indices = @transform_4, window_bounds = array<i64: 1, 32>}, {transform_indices = @transform_5, window_bounds = array<i64: 1, 32>}, {transform_indices = @transform_6, window_bounds = array<i64: 16, 32>}]} {
    %c0_i32 = arith.constant 0 : i32
    %0 = arith.cmpi eq, %arg2, %c0_i32 : i32
    %1 = arith.extui %0 : i1 to i32
    %c0_i32_0 = arith.constant 0 : i32
    %2 = arith.cmpi ne, %1, %c0_i32_0 : i32
    scf.if %2 {
      %cst_10 = arith.constant 0.000000e+00 : f32
      %12 = vector.broadcast %cst_10 : f32 to vector<16x32xf32>
      %c0_11 = arith.constant 0 : index
      %c0_12 = arith.constant 0 : index
      %13 = vector.load %arg10[%c0_11, %c0_12] : memref<16x32xf32, #tpu.memory_space<vmem>>, vector<16x32xf32>
      tpu.vector_store %arg10[%c0_11, %c0_12], %12 {strides = array<i32>} : memref<16x32xf32, #tpu.memory_space<vmem>>, vector<16x32xf32>,
    } else {
    }
    %c0 = arith.constant 0 : index
    %c0_1 = arith.constant 0 : index
    %3 = vector.load %arg10[%c0, %c0_1] : memref<16x32xf32, #tpu.memory_space<vmem>>, vector<16x32xf32>
    %c0_2 = arith.constant 0 : index
    %c0_3 = arith.constant 0 : index
    %4 = vector.load %arg3[%c0_2, %c0_3] : memref<16x64xbf16, #tpu.memory_space<vmem>>, vector<16x64xbf16>
    %c0_4 = arith.constant 0 : index
    %c0_5 = arith.constant 0 : index
    %5 = vector.load %arg4[%c0_4, %c0_5] : memref<64x32xbf16, #tpu.memory_space<vmem>>, vector<64x32xbf16>
    %cst = arith.constant dense<0.000000e+00> : vector<16x32xf32>
    %6 = tpu.matmul %4, %5, %cst {dimension_numbers = #tpu.dot_dimension_numbers<[1], [0], [0], [1], [0, 0, 1, 1], [], []>} : vector<16x64xbf16>, vector<64x32xbf16>, vector<16x32xf32> -> vector<16x32xf32>
    %7 = arith.addf %3, %6 : vector<16x32xf32>
    %c0_6 = arith.constant 0 : index
    %c0_7 = arith.constant 0 : index
    %8 = vector.load %arg10[%c0_6, %c0_7] : memref<16x32xf32, #tpu.memory_space<vmem>>, vector<16x32xf32>
    tpu.vector_store %arg10[%c0_6, %c0_7], %7 {strides = array<i32>} : memref<16x32xf32, #tpu.memory_space<vmem>>, vector<16x32xf32>,
    %c0_i32_8 = arith.constant 0 : i32
    %9 = arith.cmpi eq, %arg2, %c0_i32_8 : i32
    %10 = arith.extui %9 : i1 to i32
    %c0_i32_9 = arith.constant 0 : i32
    %11 = arith.cmpi ne, %10, %c0_i32_9 : i32
    scf.if %11 {
      %c0_10 = arith.constant 0 : index
      %c0_11 = arith.constant 0 : index
      %12 = vector.load %arg10[%c0_10, %c0_11] : memref<16x32xf32, #tpu.memory_space<vmem>>, vector<16x32xf32>
      %c0_12 = arith.constant 0 : index
      %c0_13 = arith.constant 0 : index
      %13 = vector.load %arg5[%c0_12, %c0_13] : memref<1x32xf32, #tpu.memory_space<vmem>>, vector<1x32xf32>
      %14 = vector.broadcast %13 : vector<1x32xf32> to vector<16x32xf32>
      %15 = arith.addf %12, %14 : vector<16x32xf32>
      %c0_14 = arith.constant 0 : index
      %c0_15 = arith.constant 0 : index
      %16 = vector.load %arg6[%c0_14, %c0_15] : memref<16x32xbf16, #tpu.memory_space<vmem>>, vector<16x32xbf16>
      %17 = arith.extf %16 : vector<16x32xbf16> to vector<16x32xf32>
      %18 = arith.addf %15, %17 : vector<16x32xf32>
      %cst_16 = arith.constant dense<0.000000e+00> : vector<16xf32>
      %19 = vector.multi_reduction <add>, %18, %cst_16 [1] : vector<16x32xf32> to vector<16xf32>
      %20 = vector.shape_cast %19 : vector<16xf32> to vector<16x1xf32>
      %cst_17 = arith.constant 3.200000e+01 : f32
      %21 = vector.broadcast %cst_17 : f32 to vector<16x1xf32>
      %22 = arith.divf %20, %21 : vector<16x1xf32>
      %23 = vector.broadcast %22 : vector<16x1xf32> to vector<16x32xf32>
      %24 = arith.subf %18, %23 : vector<16x32xf32>
      %25 = arith.mulf %24, %24 : vector<16x32xf32>
      %cst_18 = arith.constant dense<0.000000e+00> : vector<16xf32>
      %26 = vector.multi_reduction <add>, %25, %cst_18 [1] : vector<16x32xf32> to vector<16xf32>
      %27 = vector.shape_cast %26 : vector<16xf32> to vector<16x1xf32>
      %cst_19 = arith.constant 3.200000e+01 : f32
      %28 = vector.broadcast %cst_19 : f32 to vector<16x1xf32>
      %29 = arith.divf %27, %28 : vector<16x1xf32>
      %30 = vector.broadcast %22 : vector<16x1xf32> to vector<16x32xf32>
      %31 = arith.subf %18, %30 : vector<16x32xf32>
      %cst_20 = arith.constant 9.99999996E-13 : f32
      %32 = vector.broadcast %cst_20 : f32 to vector<16x1xf32>
      %33 = arith.addf %29, %32 : vector<16x1xf32>
      %34 = math.rsqrt %33 : vector<16x1xf32>
      %35 = vector.broadcast %34 : vector<16x1xf32> to vector<16x32xf32>
      %36 = arith.mulf %31, %35 : vector<16x32xf32>
      %c0_21 = arith.constant 0 : index
      %c0_22 = arith.constant 0 : index
      %37 = vector.load %arg7[%c0_21, %c0_22] : memref<1x32xf32, #tpu.memory_space<vmem>>, vector<1x32xf32>
      %38 = vector.broadcast %37 : vector<1x32xf32> to vector<16x32xf32>
      %39 = arith.mulf %36, %38 : vector<16x32xf32>
      %c0_23 = arith.constant 0 : index
      %c0_24 = arith.constant 0 : index
      %40 = vector.load %arg8[%c0_23, %c0_24] : memref<1x32xf32, #tpu.memory_space<vmem>>, vector<1x32xf32>
      %41 = vector.broadcast %40 : vector<1x32xf32> to vector<16x32xf32>
      %42 = arith.addf %39, %41 : vector<16x32xf32>
      %43 = arith.truncf %42 : vector<16x32xf32> to vector<16x32xbf16>
      %c0_25 = arith.constant 0 : index
      %c0_26 = arith.constant 0 : index
      %44 = vector.load %arg9[%c0_25, %c0_26] : memref<16x32xbf16, #tpu.memory_space<vmem>>, vector<16x32xbf16>
      tpu.vector_store %arg9[%c0_25, %c0_26], %43 {strides = array<i32>} : memref<16x32xbf16, #tpu.memory_space<vmem>>, vector<16x32xbf16>,
    } else {
    }
    return
  }
  func.func @transform_0(%arg0: i32, %arg1: i32, %arg2: i32) -> (i32, i32) {
    %c0_i32 = arith.constant 0 : i32
    return %arg0, %arg2 : i32, i32
  }
  func.func @transform_1(%arg0: i32, %arg1: i32, %arg2: i32) -> (i32, i32) {
    %c0_i32 = arith.constant 0 : i32
    return %arg2, %arg1 : i32, i32
  }
  func.func @transform_2(%arg0: i32, %arg1: i32, %arg2: i32) -> (i32, i32) {
    %c0_i32 = arith.constant 0 : i32
    %c0_i32_0 = arith.constant 0 : i32
    return %c0_i32, %arg1 : i32, i32
  }
  func.func @transform_3(%arg0: i32, %arg1: i32, %arg2: i32) -> (i32, i32) {
    %c0_i32 = arith.constant 0 : i32
    return %arg0, %arg1 : i32, i32
  }
  func.func @transform_4(%arg0: i32, %arg1: i32, %arg2: i32) -> (i32, i32) {
    %c0_i32 = arith.constant 0 : i32
    %c0_i32_0 = arith.constant 0 : i32
    return %c0_i32, %arg1 : i32, i32
  }
  func.func @transform_5(%arg0: i32, %arg1: i32, %arg2: i32) -> (i32, i32) {
    %c0_i32 = arith.constant 0 : i32
    %c0_i32_0 = arith.constant 0 : i32
    return %c0_i32, %arg1 : i32, i32
  }
  func.func @transform_6(%arg0: i32, %arg1: i32, %arg2: i32) -> (i32, i32) {
    %c0_i32 = arith.constant 0 : i32
    return %arg0, %arg1 : i32, i32
  }
}

module attributes {stable_mosaic.version = 11 : i64} {
  func.func @_pooler_heads_kernel(%arg0: memref<2x32xbf16, #tpu.memory_space<vmem>>, %arg1: memref<32x32xbf16, #tpu.memory_space<vmem>>, %arg2: memref<1x32xf32, #tpu.memory_space<vmem>>, %arg3: memref<32x12xbf16, #tpu.memory_space<vmem>>, %arg4: memref<1x12xf32, #tpu.memory_space<vmem>>, %arg5: memref<2x12xf32, #tpu.memory_space<vmem>>) attributes {dimension_semantics = [], scalar_prefetch = 0 : i64, scratch_operands = 0 : i64, tpu.core_type = #tpu.core_type<tc>} {
    %c0 = arith.constant 0 : index
    %c0_0 = arith.constant 0 : index
    %0 = vector.load %arg0[%c0, %c0_0] : memref<2x32xbf16, #tpu.memory_space<vmem>>, vector<2x32xbf16>
    %c0_1 = arith.constant 0 : index
    %c0_2 = arith.constant 0 : index
    %1 = vector.load %arg1[%c0_1, %c0_2] : memref<32x32xbf16, #tpu.memory_space<vmem>>, vector<32x32xbf16>
    %cst = arith.constant dense<0.000000e+00> : vector<2x32xf32>
    %2 = tpu.matmul %0, %1, %cst {dimension_numbers = #tpu.dot_dimension_numbers<[1], [0], [0], [1], [0, 0, 1, 1], [], []>} : vector<2x32xbf16>, vector<32x32xbf16>, vector<2x32xf32> -> vector<2x32xf32>
    %c0_3 = arith.constant 0 : index
    %c0_4 = arith.constant 0 : index
    %3 = vector.load %arg2[%c0_3, %c0_4] : memref<1x32xf32, #tpu.memory_space<vmem>>, vector<1x32xf32>
    %4 = vector.broadcast %3 : vector<1x32xf32> to vector<2x32xf32>
    %5 = arith.addf %2, %4 : vector<2x32xf32>
    %6 = math.tanh %5 : vector<2x32xf32>
    %7 = arith.truncf %6 : vector<2x32xf32> to vector<2x32xbf16>
    %c0_5 = arith.constant 0 : index
    %c0_6 = arith.constant 0 : index
    %8 = vector.load %arg3[%c0_5, %c0_6] : memref<32x12xbf16, #tpu.memory_space<vmem>>, vector<32x12xbf16>
    %cst_7 = arith.constant dense<0.000000e+00> : vector<2x12xf32>
    %9 = tpu.matmul %7, %8, %cst_7 {dimension_numbers = #tpu.dot_dimension_numbers<[1], [0], [0], [1], [0, 0, 1, 1], [], []>} : vector<2x32xbf16>, vector<32x12xbf16>, vector<2x12xf32> -> vector<2x12xf32>
    %c0_8 = arith.constant 0 : index
    %c0_9 = arith.constant 0 : index
    %10 = vector.load %arg4[%c0_8, %c0_9] : memref<1x12xf32, #tpu.memory_space<vmem>>, vector<1x12xf32>
    %11 = vector.broadcast %10 : vector<1x12xf32> to vector<2x12xf32>
    %12 = arith.addf %9, %11 : vector<2x12xf32>
    %c0_10 = arith.constant 0 : index
    %c0_11 = arith.constant 0 : index
    %13 = vector.load %arg5[%c0_10, %c0_11] : memref<2x12xf32, #tpu.memory_space<vmem>>, vector<2x12xf32>
    tpu.vector_store %arg5[%c0_10, %c0_11], %12 {strides = array<i32>} : memref<2x12xf32, #tpu.memory_space<vmem>>, vector<2x12xf32>,
    return
  }
}

</mosaic_0001>

<llo_original>
// kernel: _lambda_.12
$region0: #{_lambda_.12}
  #allocation0 [shape = 'u32[]', space=smem, size = 0x4, offset = 0x4, fixed_abs, tag = 'smem constant byte address 0x4 - core index']
  #allocation1 [shape = 'u32[144,128]{1,0:T(1,128)}', space=vmem, size = 0x12000, scoped, tag = 'internal scratch']
  %s0 = inlined_call_operand.vmem [shape: f32[2,8,32], index: 0, kind: input, shape index: {}]
  %s1 = inlined_call_operand.vmem [shape: f32[8,32], index: 1, kind: input, shape index: {}]
  %s2 = inlined_call_operand.vmem [shape: f32[1,32], index: 2, kind: input, shape index: {}]
  %s3 = inlined_call_operand.vmem [shape: f32[1,32], index: 3, kind: input, shape index: {}]
  %s4 = inlined_call_operand.vmem [shape: f32[1,32], index: 4, kind: input, shape index: {}]
  %s5 = inlined_call_operand.vmem [shape: bf16[2,8,32], index: 5, kind: output, shape index: {}]
  %s6 = sld [smem:[#allocation0]]
  $region53: #{_lambda_.12} parent=0
    _
  %s8 = ssub.s32 1, %s6
  %s9 = scalar_select 0, %s8, %s6
  loop: start=0, step=1, limit=4
  $region2: #{_lambda_.12} parent=0 // loop_pre_header
    _
  $region3: #{_lambda_.12} parent=0 // loop_header
    %s11 = sphi 0, %s15
    %p12 = scmp.ge.s32.totalorder %s11, 4
    %s18 = sphi 0, %s30
    %s19 = sphi 0, %s26
    %s20 = sphi 0, %s18
    %s21 = sphi 0, %s19
    %s22 = sphi 0, %s20
    %s23 = sphi 0, %s21
    %s35 = sphi 0, %s37
    %s38 = sphi 0, %s35
    %s39 = sphi 0, %s38
    %s55 = sphi 0, %s39
    %s61 = sphi 0, %s63
    %s64 = sphi 0, %s61
    %s65 = sphi 0, %s64
    %s81 = sphi 0, %s65
    %s85 = sphi 0, %s85
    %s87 = sphi 0, %s85
    %s88 = sphi 0, %s87
    %s102 = sphi 0, %s88
    %s106 = sphi 0, %s106
    %s108 = sphi 0, %s106
    %s109 = sphi 0, %s108
    %s123 = sphi 0, %s109
    %s127 = sphi 0, %s127
    %s129 = sphi 0, %s127
    %s130 = sphi 0, %s129
    %s144 = sphi 0, %s130
    %s152 = sphi 0, %s154
    %s155 = sphi 0, %s152
    %s156 = sphi 0, %s155
    %s172 = sphi 0, %s156
  $region4: #{_lambda_.12} parent=0 // loop_header_branch
    %14 = sbr.rel (%p12) target = $region8
  $region5: #{_lambda_.12} parent=0 // loop_body
    %s16 = ssub.s32 %s11, 1
    %s17 = ssub.s32 %s11, 2
    %s24 = sadd.s32 1, %s19
    %p25 = scmp.ge.s32.totalorder %s24, 1
    %s26 = scalar_select %p25, 0, %s24
    %s27 = sadd.s32 1, %s18
    %s28 = scalar_select %p25, %s27, %s18
    %p29 = scmp.ge.s32.totalorder %s28, 2
    %s30 = scalar_select %p29, 0, %s28
    %s31 = ssub.s32 %s18, %s30
    %s32 = ssub.s32 %s19, %s26
    %s33 = sor.u32 %s31, %s32
    %p34 = scmp.eq.s32.totalorder %s33, 0
    %s36 = sadd.s32 %s35, 1
    %s37 = scalar_select %p34, %s35, %s36
    %p40 = pneg %p34
    %p41 = scmp.eq.s32.totalorder %s11, 1
    %p42 = por %p40, %p41
    %p43 = scmp.ne.s32.totalorder %s35, %s38
    %p44 = scmp.eq.s32.totalorder %s11, 0
    %p45 = por %p43, %p44
    %p46 = scmp.ne.s32.totalorder %s35, %s38
    %p47 = scmp.eq.s32.totalorder %s16, 1
    %p48 = por %p46, %p47
    %p49 = scmp.ne.s32.totalorder %s38, %s39
    %p50 = scmp.eq.s32.totalorder %s16, 0
    %p51 = por %p49, %p50
    %p52 = scmp.ne.s32.totalorder %s38, %s39
    %p53 = scmp.eq.s32.totalorder %s17, 1
    %p54 = por %p52, %p53
    %p56 = scmp.ne.s32.totalorder %s39, %s55
    %p57 = scmp.eq.s32.totalorder %s17, 0
    %p58 = por %p56, %p57
    %s59 = ssub.s32 %s19, %s26
    %p60 = scmp.eq.s32.totalorder %s59, 0
    %s62 = sadd.s32 %s61, 1
    %s63 = scalar_select %p60, %s61, %s62
    %p66 = pneg %p60
    %p67 = scmp.eq.s32.totalorder %s11, 1
    %p68 = por %p66, %p67
    %p69 = scmp.ne.s32.totalorder %s61, %s64
    %p70 = scmp.eq.s32.totalorder %s11, 0
    %p71 = por %p69, %p70
    %p72 = scmp.ne.s32.totalorder %s61, %s64
    %p73 = scmp.eq.s32.totalorder %s16, 1
    %p74 = por %p72, %p73
    %p75 = scmp.ne.s32.totalorder %s64, %s65
    %p76 = scmp.eq.s32.totalorder %s16, 0
    %p77 = por %p75, %p76
    %p78 = scmp.ne.s32.totalorder %s64, %s65
    %p79 = scmp.eq.s32.totalorder %s17, 1
    %p80 = por %p78, %p79
    %p82 = scmp.ne.s32.totalorder %s65, %s81
    %p83 = scmp.eq.s32.totalorder %s17, 0
    %p84 = por %p82, %p83
    %s86 = sadd.s32 %s85, 1
    %p89 = scmp.eq.s32.totalorder %s11, 1
    %p90 = scmp.ne.s32.totalorder %s85, %s87
    %p91 = scmp.eq.s32.totalorder %s11, 0
    %p92 = por %p90, %p91
    %p93 = scmp.ne.s32.totalorder %s85, %s87
    %p94 = scmp.eq.s32.totalorder %s16, 1
    %p95 = por %p93, %p94
    %p96 = scmp.ne.s32.totalorder %s87, %s88
    %p97 = scmp.eq.s32.totalorder %s16, 0
    %p98 = por %p96, %p97
    %p99 = scmp.ne.s32.totalorder %s87, %s88
    %p100 = scmp.eq.s32.totalorder %s17, 1
    %p101 = por %p99, %p100
    %p103 = scmp.ne.s32.totalorder %s88, %s102
    %p104 = scmp.eq.s32.totalorder %s17, 0
    %p105 = por %p103, %p104
    %s107 = sadd.s32 %s106, 1
    %p110 = scmp.eq.s32.totalorder %s11, 1
    %p111 = scmp.ne.s32.totalorder %s106, %s108
    %p112 = scmp.eq.s32.totalorder %s11, 0
    %p113 = por %p111, %p112
    %p114 = scmp.ne.s32.totalorder %s106, %s108
    %p115 = scmp.eq.s32.totalorder %s16, 1
    %p116 = por %p114, %p115
    %p117 = scmp.ne.s32.totalorder %s108, %s109
    %p118 = scmp.eq.s32.totalorder %s16, 0
    %p119 = por %p117, %p118
    %p120 = scmp.ne.s32.totalorder %s108, %s109
    %p121 = scmp.eq.s32.totalorder %s17, 1
    %p122 = por %p120, %p121
    %p124 = scmp.ne.s32.totalorder %s109, %s123
    %p125 = scmp.eq.s32.totalorder %s17, 0
    %p126 = por %p124, %p125
    %s128 = sadd.s32 %s127, 1
    %p131 = scmp.eq.s32.totalorder %s11, 1
    %p132 = scmp.ne.s32.totalorder %s127, %s129
    %p133 = scmp.eq.s32.totalorder %s11, 0
    %p134 = por %p132, %p133
    %p135 = scmp.ne.s32.totalorder %s127, %s129
    %p136 = scmp.eq.s32.totalorder %s16, 1
    %p137 = por %p135, %p136
    %p138 = scmp.ne.s32.totalorder %s129, %s130
    %p139 = scmp.eq.s32.totalorder %s16, 0
    %p140 = por %p138, %p139
    %p141 = scmp.ne.s32.totalorder %s129, %s130
    %p142 = scmp.eq.s32.totalorder %s17, 1
    %p143 = por %p141, %p142
    %p145 = scmp.ne.s32.totalorder %s130, %s144
    %p146 = scmp.eq.s32.totalorder %s17, 0
    %p147 = por %p145, %p146
    %s148 = ssub.s32 %s18, %s30
    %s149 = ssub.s32 %s19, %s26
    %s150 = sor.u32 %s148, %s149
    %p151 = scmp.eq.s32.totalorder %s150, 0
    %s153 = sadd.s32 %s152, 1
    %s154 = scalar_select %p151, %s152, %s153
    %p157 = pneg %p151
    %p158 = scmp.eq.s32.totalorder %s11, 1
    %p159 = por %p157, %p158
    %p160 = scmp.ne.s32.totalorder %s152, %s155
    %p161 = scmp.eq.s32.totalorder %s11, 0
    %p162 = por %p160, %p161
    %p163 = scmp.ne.s32.totalorder %s152, %s155
    %p164 = scmp.eq.s32.totalorder %s16, 1
    %p165 = por %p163, %p164
    %p166 = scmp.ne.s32.totalorder %s155, %s156
    %p167 = scmp.eq.s32.totalorder %s16, 0
    %p168 = por %p166, %p167
    %p169 = scmp.ne.s32.totalorder %s155, %s156
    %p170 = scmp.eq.s32.totalorder %s17, 1
    %p171 = por %p169, %p170
    %p173 = scmp.ne.s32.totalorder %s156, %s172
    %p174 = scmp.eq.s32.totalorder %s17, 0
    %p175 = por %p173, %p174
    %p176 = scmp.le.s32.totalorder 1, %s11
    %p177 = scmp.lt.s32.totalorder %s11, 3
    %p178 = pnand %p176, %p177
    %p179 = pneg %p178
    // Predicated region
    $region9: #{_lambda_.12} parent=5 // pred_check
      _
    $region10: #{_lambda_.12} parent=5 // pred_check_branch
      %181 = sbr.rel (%p178) target = $region12
    $region11: #{_lambda_.12} parent=5 // pred_region
      %s182 = ssub.s32 %s11, 1
      // Predicated region
      $region13: #{_lambda_.12} parent=11 // pred_check
        %p183 = pneg %p77
      $region14: #{_lambda_.12} parent=11 // pred_check_branch
        %185 = sbr.rel (%p183) target = $region16
      $region15: #{_lambda_.12} parent=11 // pred_region
        %p186 = scmp.lt.s32.totalorder %s21, 0
        %s187 = scalar_select %p186, %s21, 0
        %s188 = smul.addr %s187, 8
        %s189 = scalar_lea.vmem %s1, %s188
      $region16: #{_lambda_.12} parent=11 // pred_fallthru
        _
      // Predicated region
      $region17: #{_lambda_.12} parent=11 // pred_check
        %p190 = pneg %p98
      $region18: #{_lambda_.12} parent=11 // pred_check_branch
        %192 = sbr.rel (%p190) target = $region20
      $region19: #{_lambda_.12} parent=11 // pred_region
        _
      $region20: #{_lambda_.12} parent=11 // pred_fallthru
        _
      // Predicated region
      $region21: #{_lambda_.12} parent=11 // pred_check
        %p193 = pneg %p119
      $region22: #{_lambda_.12} parent=11 // pred_check_branch
        %195 = sbr.rel (%p193) target = $region24
      $region23: #{_lambda_.12} parent=11 // pred_region
        _
      $region24: #{_lambda_.12} parent=11 // pred_fallthru
        _
      // Predicated region
      $region25: #{_lambda_.12} parent=11 // pred_check
        %p196 = pneg %p140
      $region26: #{_lambda_.12} parent=11 // pred_check_branch
        %198 = sbr.rel (%p196) target = $region28
      $region27: #{_lambda_.12} parent=11 // pred_region
        _
      $region28: #{_lambda_.12} parent=11 // pred_fallthru
        _
    $region12: #{_lambda_.12} parent=5 // pred_fallthru
      _
    %p199 = scmp.lt.s32.totalorder %s11, 2
    // Predicated region
    $region29: #{_lambda_.12} parent=5 // pred_check
      %p200 = pneg %p199
    $region30: #{_lambda_.12} parent=5 // pred_check_branch
      %202 = sbr.rel (%p200) target = $region32
    $region31: #{_lambda_.12} parent=5 // pred_region
      // Predicated region
      $region33: #{_lambda_.12} parent=31 // pred_check
        %p203 = pneg %p45
      $region34: #{_lambda_.12} parent=31 // pred_check_branch
        %205 = sbr.rel (%p203) target = $region36
      $region35: #{_lambda_.12} parent=31 // pred_region
        %p206 = scmp.lt.s32.totalorder %s18, 1
        %s207 = scalar_select %p206, %s18, 1
        %p208 = scmp.lt.s32.totalorder %s19, 0
        %s209 = scalar_select %p208, %s19, 0
        %s210 = sadd.s32 %s209, %s207
        %s211 = smul.addr %s210, 8
        %s212 = scalar_lea.vmem %s0, %s211
      $region36: #{_lambda_.12} parent=31 // pred_fallthru
        _
    $region32: #{_lambda_.12} parent=5 // pred_fallthru
      _
    %p213 = scmp.le.s32.totalorder 1, %s11
    %p214 = scmp.lt.s32.totalorder %s11, 3
    %p215 = pnand %p213, %p214
    %p216 = pneg %p215
    // Predicated region
    $region37: #{_lambda_.12} parent=5 // pred_check
      _
    $region38: #{_lambda_.12} parent=5 // pred_check_branch
      %218 = sbr.rel (%p215) target = $region40
    $region39: #{_lambda_.12} parent=5 // pred_region
      %s219 = ssub.s32 %s11, 1
      %p220 = scmp.lt.s32.totalorder %s20, 1
      %s221 = scalar_select %p220, %s20, 1
      %p222 = scmp.lt.s32.totalorder %s21, 0
      %s223 = scalar_select %p222, %s21, 0
      %s224 = sadd.s32 %s223, %s221
      %s225 = smul.addr %s224, 8
      %s226 = scalar_lea.vmem %s0, %s225
      %p227 = pneg %p51
      %p228 = pneg %p48
      %p229 = scmp.lt.s32.totalorder %s21, 0
      %s230 = scalar_select %p229, %s21, 0
      %s231 = smul.addr %s230, 8
      %s232 = scalar_lea.vmem %s1, %s231
      %p233 = pneg %p77
      %p234 = pneg %p74
      %p235 = pneg %p98
      %p236 = pneg %p95
      %p237 = pneg %p119
      %p238 = pneg %p116
      %p239 = pneg %p140
      %p240 = pneg %p137
      %p241 = pneg %p168
      %p242 = pneg %p165
      %p243 = scmp.lt.s32.totalorder %s20, 1
      %s244 = scalar_select %p243, %s20, 1
      %p245 = scmp.lt.s32.totalorder %s21, 0
      %s246 = scalar_select %p245, %s21, 0
      %s247 = sadd.s32 %s246, %s244
      %s248 = smul.addr %s247, 4
      %s249 = scalar_lea.vmem %s5, %s248
      %p250 = scmp.lt.s32.totalorder %s20, 1
      %s251 = scalar_select %p250, %s20, 1
      %p252 = scmp.lt.s32.totalorder %s21, 0
      %s253 = scalar_select %p252, %s21, 0
      %s254 = sadd.s32 %s253, %s251
      %s255 = smul.addr %s254, 8
      %s256 = scalar_lea.vmem %s0, %s255
      %p257 = scmp.lt.s32.totalorder %s21, 0
      %s258 = scalar_select %p257, %s21, 0
      %s259 = smul.addr %s258, 8
      %s260 = scalar_lea.vmem %s1, %s259
      %p261 = scmp.lt.s32.totalorder %s20, 1
      %s262 = scalar_select %p261, %s20, 1
      %p263 = scmp.lt.s32.totalorder %s21, 0
      %s264 = scalar_select %p263, %s21, 0
      %s265 = sadd.s32 %s264, %s262
      %s266 = smul.addr %s265, 4
      %s267 = scalar_lea.vmem %s5, %s266
      %v268 = vld [vmem:[%s256] sm:$0xff]
      %v269 = vld [vmem:[%s260] sm:$0xff]
      %v270 = vadd.f32 %v268, %v269
      %v271 = vld [vmem:[%s2] sm:$0x1]
      %v273 = vlaneseq
      %v274 = vshrl.u32 %v273, 7
      %v275 = vsub.s32 0, %v274
      %v276 = vrot.slane %v271, %v275
      %v278 = vadd.f32 %v270, %v276
      %vm279 = vcmask 261120
      %v280 = vsel %vm279, %v278, 0.0
      %281 = vadd.xlane.f32.xlu0 %v280
      %v282 = vpop.xlane.xlu0 %281
      %v283 = vrcp.pop 32.0
      %v284 = vmul.f32 %v282, %v283
      %v285 = vsub.f32 %v278, %v284
      %v286 = vmul.f32 %v285, %v285
      %v287 = vsel %vm279, %v286, 0.0
      %288 = vadd.xlane.f32.xlu0 %v287
      %v289 = vpop.xlane.xlu0 %288
      %v290 = vmul.f32 %v289, %v283
      %v291 = vadd.f32 %v290, 1e-12
      %v292 = vrsqrt.pop %v291
      %v293 = vmul.f32 %v285, %v292
      %v294 = vld [vmem:[%s3] sm:$0x1]
      %v296 = vlaneseq
      %v297 = vshrl.u32 %v296, 7
      %v298 = vsub.s32 0, %v297
      %v299 = vrot.slane %v294, %v298
      %v301 = vmul.f32 %v293, %v299
      %v302 = vld [vmem:[%s4] sm:$0x1]
      %v304 = vlaneseq
      %v305 = vshrl.u32 %v304, 7
      %v306 = vsub.s32 0, %v305
      %v307 = vrot.slane %v302, %v306
      %v309 = vadd.f32 %v301, %v307
      %v310 = vpack.c.bf16 %v309, %v309
      %vm311 = vcmask 257024
      %312 = vst.msk [vmem:[%s267] sm:$0xf] %vm311, %v310
      %p313 = scmp.lt.s32.totalorder %s20, 1
      %s314 = scalar_select %p313, %s20, 1
      %p315 = scmp.lt.s32.totalorder %s21, 0
      %s316 = scalar_select %p315, %s21, 0
      %s317 = sadd.s32 %s316, %s314
      %s318 = smul.addr %s317, 4
      %s319 = scalar_lea.vmem %s5, %s318
      // Predicated region
      $region41: #{_lambda_.12} parent=39 // pred_check
        %p320 = pneg %p165
      $region42: #{_lambda_.12} parent=39 // pred_check_branch
        %322 = sbr.rel (%p320) target = $region44
      $region43: #{_lambda_.12} parent=39 // pred_region
        _
      $region44: #{_lambda_.12} parent=39 // pred_fallthru
        _
    $region40: #{_lambda_.12} parent=5 // pred_fallthru
      _
    %p323 = scmp.le.s32.totalorder 2, %s11
    // Predicated region
    $region45: #{_lambda_.12} parent=5 // pred_check
      %p324 = pneg %p323
    $region46: #{_lambda_.12} parent=5 // pred_check_branch
      %326 = sbr.rel (%p324) target = $region48
    $region47: #{_lambda_.12} parent=5 // pred_region
      %s327 = ssub.s32 %s11, 2
      // Predicated region
      $region49: #{_lambda_.12} parent=47 // pred_check
        %p328 = pneg %p171
      $region50: #{_lambda_.12} parent=47 // pred_check_branch
        %330 = sbr.rel (%p328) target = $region52
      $region51: #{_lambda_.12} parent=47 // pred_region
        %p331 = scmp.lt.s32.totalorder %s22, 1
        %s332 = scalar_select %p331, %s22, 1
        %p333 = scmp.lt.s32.totalorder %s23, 0
        %s334 = scalar_select %p333, %s23, 0
        %s335 = sadd.s32 %s334, %s332
        %s336 = smul.addr %s335, 4
        %s337 = scalar_lea.vmem %s5, %s336
      $region52: #{_lambda_.12} parent=47 // pred_fallthru
        _
    $region48: #{_lambda_.12} parent=5 // pred_fallthru
      _
  $region6: #{_lambda_.12} parent=0 // loop_footer
    %s15 = sadd.s32 1, %s11
  $region7: #{_lambda_.12} parent=0 // loop_footer_branch
    %10 = sbr.rel target = $region3
  $region8: #{_lambda_.12} parent=0 // loop_exit
    _

// kernel: _lambda_.13
$region0: #{_lambda_.13}
  #allocation0 [shape = 'u32[]', space=smem, size = 0x4, offset = 0x4, fixed_abs, tag = 'smem constant byte address 0x4 - core index']
  #allocation1 [shape = 'u32[144,128]{1,0:T(1,128)}', space=vmem, size = 0x12000, scoped, tag = 'internal scratch']
  #allocation2 [shape = 'f32[16,96]{1,0:T(8,128)}', space=vmem, size = 0x2000, scoped, tag = 'scratch operand']
  %s0 = inlined_call_operand.vmem [shape: bf16[16,32], index: 0, kind: input, shape index: {}]
  %s1 = inlined_call_operand.vmem [shape: bf16[32,96], index: 1, kind: input, shape index: {}]
  %s2 = inlined_call_operand.vmem [shape: f32[1,96], index: 2, kind: input, shape index: {}]
  %s3 = inlined_call_operand.vmem [shape: bf16[16,96], index: 3, kind: output, shape index: {}]
  %s4 = sld [smem:[#allocation0]]
  $region30: #{_lambda_.13} parent=0
    _
  %s6 = ssub.s32 1, %s4
  %s7 = scalar_select 0, %s6, %s4
  // Predicated region
  $region2: #{_lambda_.13} parent=0 // pred_check
    _
  $region3: #{_lambda_.13} parent=0 // pred_check_branch
    %9 = sbr.rel (0) target = $region5
  $region4: #{_lambda_.13} parent=0 // pred_region
    _
  $region5: #{_lambda_.13} parent=0 // pred_fallthru
    _
  // Predicated region
  $region6: #{_lambda_.13} parent=0 // pred_check
    _
  $region7: #{_lambda_.13} parent=0 // pred_check_branch
    %11 = sbr.rel (0) target = $region9
  $region8: #{_lambda_.13} parent=0 // pred_region
    _
  $region9: #{_lambda_.13} parent=0 // pred_fallthru
    _
  // Predicated region
  $region10: #{_lambda_.13} parent=0 // pred_check
    _
  $region11: #{_lambda_.13} parent=0 // pred_check_branch
    %13 = sbr.rel (0) target = $region13
  $region12: #{_lambda_.13} parent=0 // pred_region
    _
  $region13: #{_lambda_.13} parent=0 // pred_fallthru
    _
  %p15 = scmp.eq.s32.totalorder 0, 0
  // Predicated region
  $region14: #{_lambda_.13} parent=0 // pred_check
    %p16 = pneg %p15
  $region15: #{_lambda_.13} parent=0 // pred_check_branch
    %18 = sbr.rel (%p16) target = $region17
  $region16: #{_lambda_.13} parent=0 // pred_region
    %vm19 = vcmask 785408
    %20 = vst.msk [vmem:[#allocation2] sm:$0xff] %vm19, 0.0
    %21 = vst.msk [vmem:[#allocation2 + $0x8] sm:$0xff] %vm19, 0.0
  $region17: #{_lambda_.13} parent=0 // pred_fallthru
    _
  %v22 = vld [vmem:[#allocation2] sm:$0xff]
  %v23 = vld [vmem:[#allocation2 + $0x8] sm:$0xff]
  %v24 = vld [vmem:[%s0] sm:$0xf]
  %v25 = vld [vmem:[%s0 + $0x4] sm:$0xf]
  %v26 = vld [vmem:[%s1] sm:$0xf]
  %v27 = vld [vmem:[%s1 + $0x4] sm:$0xf]
  %v28 = vld [vmem:[%s1 + $0x8] sm:$0xf]
  %v29 = vld [vmem:[%s1 + $0xc] sm:$0xf]
  %v32 = vunpack.c.l.b16 %v24
  %v33 = vunpack.c.l.b16 %v25
  %v34 = vpack.c.b16 %v33, %v32
  %v39 = vunpack.c.l.b16 %v26
  %v40 = vunpack.c.l.b16 %v27
  %v41 = vunpack.c.l.b16 %v28
  %v42 = vunpack.c.l.b16 %v29
  %v43 = vpack.c.b16 %v40, %v39
  %v44 = vpack.c.b16 %v42, %v41
  %vm47 = vcmask 261120
  %v49 = vsel %vm47, %v34, 0
  %51 = vmatprep.subr.bf16.mxu0 0
  %52 = vmatpush1.bf16.msra.mxu0 %v43
  %53 = vmatprep.subr.bf16.mxu0 0
  %54 = vmatpush1.bf16.msra.mxu0 %v44
  %55 = vmatprep.subr.bf16.mxu0 0
  %56 = vmatpush1.bf16.msra.mxu0 0
  %57 = vmatprep.subr.bf16.mxu0 0
  %58 = vmatpush1.bf16.msra.mxu0 0
  %59 = vmatprep.subr.bf16.mxu0 0
  %60 = vmatpush1.bf16.msra.mxu0 0
  %61 = vmatprep.subr.bf16.mxu0 0
  %62 = vmatpush1.bf16.msra.mxu0 0
  %63 = vmatprep.subr.bf16.mxu0 0
  %64 = vmatpush1.bf16.msra.mxu0 0
  %65 = vmatprep.subr.bf16.mxu0 0
  %66 = vmatpush1.bf16.msra.mxu0 0
  %67 = vmatprep.subr.bf16.mxu0 0
  %68 = vmatpush1.bf16.msra.mxu0 0
  %69 = vmatprep.subr.bf16.mxu0 0
  %70 = vmatpush1.bf16.msra.mxu0 0
  %71 = vmatprep.subr.bf16.mxu0 0
  %72 = vmatpush1.bf16.msra.mxu0 0
  %73 = vmatprep.subr.bf16.mxu0 0
  %74 = vmatpush1.bf16.msra.mxu0 0
  %75 = vmatprep.subr.bf16.mxu0 0
  %76 = vmatpush1.bf16.msra.mxu0 0
  %77 = vmatprep.subr.bf16.mxu0 0
  %78 = vmatpush1.bf16.msra.mxu0 0
  %79 = vmatprep.subr.bf16.mxu0 0
  %80 = vmatpush1.bf16.msra.mxu0 0
  %81 = vmatprep.subr.bf16.mxu0 0
  %82 = vmatpush1.bf16.msra.mxu0 0
  %83 = vmatprep.mubr.bf16.mxu0 0
  %84 = vmatmul.mubr.bf16.gmra.mrb[0].mxu0 %v49
  %v85 = vpop.f32.mrb[0].mxu0
  %v86 = vadd.f32 0.0, %v85
  %v87 = vpop.f32.mrb[0].mxu0
  %v88 = vpop.f32.mrb[0].mxu0
  %v89 = vadd.f32 0.0, %v88
  %v90 = vpop.f32.mrb[0].mxu0
  %91 = vdwg.mxu0
  %v92 = vadd.f32 %v22, %v86
  %v93 = vadd.f32 %v23, %v89
  %vm94 = vcmask 785408
  %95 = vst.msk [vmem:[#allocation2] sm:$0xff] %vm94, %v92
  %96 = vst.msk [vmem:[#allocation2 + $0x8] sm:$0xff] %vm94, %v93
  // Predicated region
  $region18: #{_lambda_.13} parent=0 // pred_check
    %p97 = pneg %p15
  $region19: #{_lambda_.13} parent=0 // pred_check_branch
    %99 = sbr.rel (%p97) target = $region21
  $region20: #{_lambda_.13} parent=0 // pred_region
    %v100 = vld [vmem:[#allocation2] sm:$0xff]
    %v101 = vld [vmem:[#allocation2 + $0x8] sm:$0xff]
    %v102 = vld [vmem:[%s2] sm:$0x1]
    %v104 = vlaneseq
    %v105 = vshrl.u32 %v104, 7
    %v106 = vsub.s32 0, %v105
    %v107 = vrot.slane %v102, %v106
    %v109 = vadd.f32 %v100, %v107
    %v110 = vadd.f32 %v101, %v107
    %v111 = vpack.c.bf16 %v110, %v109
    %v113 = vunpack.c.l.b16 %v111
    %v114 = vunpack.c.h.b16 %v111
    %v115 = vpack.c.b16 %v113, %v113
    %v116 = vpack.c.b16 %v114, %v114
    %vm119 = vcmask 781312
    %120 = vst.msk [vmem:[%s3] sm:$0xf] %vm119, %v115
    %121 = vst.msk [vmem:[%s3 + $0x4] sm:$0xf] %vm119, %v116
  $region21: #{_lambda_.13} parent=0 // pred_fallthru
    _
  // Predicated region
  $region22: #{_lambda_.13} parent=0 // pred_check
    _
  $region23: #{_lambda_.13} parent=0 // pred_check_branch
    %123 = sbr.rel (0) target = $region25
  $region24: #{_lambda_.13} parent=0 // pred_region
    _
  $region25: #{_lambda_.13} parent=0 // pred_fallthru
    _
  // Predicated region
  $region26: #{_lambda_.13} parent=0 // pred_check
    _
  $region27: #{_lambda_.13} parent=0 // pred_check_branch
    %125 = sbr.rel (0) target = $region29
  $region28: #{_lambda_.13} parent=0 // pred_region
    _
  $region29: #{_lambda_.13} parent=0 // pred_fallthru
    _

// kernel: _lambda_.15
$region0: #{_lambda_.15}
  #allocation0 [shape = 'u32[]', space=smem, size = 0x4, offset = 0x4, fixed_abs, tag = 'smem constant byte address 0x4 - core index']
  #allocation1 [shape = 'u32[144,128]{1,0:T(1,128)}', space=vmem, size = 0x12000, scoped, tag = 'internal scratch']
  #allocation2 [shape = 'f32[16,32]{1,0:T(8,128)}', space=vmem, size = 0x2000, scoped, tag = 'scratch operand']
  %s0 = inlined_call_operand.vmem [shape: bf16[16,32], index: 0, kind: input, shape index: {}]
  %s1 = inlined_call_operand.vmem [shape: bf16[32,32], index: 1, kind: input, shape index: {}]
  %s2 = inlined_call_operand.vmem [shape: f32[1,32], index: 2, kind: input, shape index: {}]
  %s3 = inlined_call_operand.vmem [shape: bf16[16,32], index: 3, kind: input, shape index: {}]
  %s4 = inlined_call_operand.vmem [shape: f32[1,32], index: 4, kind: input, shape index: {}]
  %s5 = inlined_call_operand.vmem [shape: f32[1,32], index: 5, kind: input, shape index: {}]
  %s6 = inlined_call_operand.vmem [shape: bf16[16,32], index: 6, kind: output, shape index: {}]
  %s7 = sld [smem:[#allocation0]]
  $region42: #{_lambda_.15} parent=0
    _
  %s9 = ssub.s32 1, %s7
  %s10 = scalar_select 0, %s9, %s7
  // Predicated region
  $region2: #{_lambda_.15} parent=0 // pred_check
    _
  $region3: #{_lambda_.15} parent=0 // pred_check_branch
    %12 = sbr.rel (0) target = $region5
  $region4: #{_lambda_.15} parent=0 // pred_region
    _
  $region5: #{_lambda_.15} parent=0 // pred_fallthru
    _
  // Predicated region
  $region6: #{_lambda_.15} parent=0 // pred_check
    _
  $region7: #{_lambda_.15} parent=0 // pred_check_branch
    %14 = sbr.rel (0) target = $region9
  $region8: #{_lambda_.15} parent=0 // pred_region
    _
  $region9: #{_lambda_.15} parent=0 // pred_fallthru
    _
  // Predicated region
  $region10: #{_lambda_.15} parent=0 // pred_check
    _
  $region11: #{_lambda_.15} parent=0 // pred_check_branch
    %16 = sbr.rel (0) target = $region13
  $region12: #{_lambda_.15} parent=0 // pred_region
    _
  $region13: #{_lambda_.15} parent=0 // pred_fallthru
    _
  // Predicated region
  $region14: #{_lambda_.15} parent=0 // pred_check
    _
  $region15: #{_lambda_.15} parent=0 // pred_check_branch
    %18 = sbr.rel (0) target = $region17
  $region16: #{_lambda_.15} parent=0 // pred_region
    _
  $region17: #{_lambda_.15} parent=0 // pred_fallthru
    _
  // Predicated region
  $region18: #{_lambda_.15} parent=0 // pred_check
    _
  $region19: #{_lambda_.15} parent=0 // pred_check_branch
    %20 = sbr.rel (0) target = $region21
  $region20: #{_lambda_.15} parent=0 // pred_region
    _
  $region21: #{_lambda_.15} parent=0 // pred_fallthru
    _
  // Predicated region
  $region22: #{_lambda_.15} parent=0 // pred_check
    _
  $region23: #{_lambda_.15} parent=0 // pred_check_branch
    %22 = sbr.rel (0) target = $region25
  $region24: #{_lambda_.15} parent=0 // pred_region
    _
  $region25: #{_lambda_.15} parent=0 // pred_fallthru
    _
  %p24 = scmp.eq.s32.totalorder 0, 0
  // Predicated region
  $region26: #{_lambda_.15} parent=0 // pred_check
    %p25 = pneg %p24
  $region27: #{_lambda_.15} parent=0 // pred_check_branch
    %27 = sbr.rel (%p25) target = $region29
  $region28: #{_lambda_.15} parent=0 // pred_region
    %vm28 = vcmask 261120
    %29 = vst.msk [vmem:[#allocation2] sm:$0xff] %vm28, 0.0
    %30 = vst.msk [vmem:[#allocation2 + $0x8] sm:$0xff] %vm28, 0.0
  $region29: #{_lambda_.15} parent=0 // pred_fallthru
    _
  %v31 = vld [vmem:[#allocation2] sm:$0xff]
  %v32 = vld [vmem:[#allocation2 + $0x8] sm:$0xff]
  %v33 = vld [vmem:[%s0] sm:$0xf]
  %v34 = vld [vmem:[%s0 + $0x4] sm:$0xf]
  %v35 = vld [vmem:[%s1] sm:$0xf]
  %v36 = vld [vmem:[%s1 + $0x4] sm:$0xf]
  %v37 = vld [vmem:[%s1 + $0x8] sm:$0xf]
  %v38 = vld [vmem:[%s1 + $0xc] sm:$0xf]
  %v41 = vunpack.c.l.b16 %v33
  %v42 = vunpack.c.l.b16 %v34
  %v43 = vpack.c.b16 %v42, %v41
  %v48 = vunpack.c.l.b16 %v35
  %v49 = vunpack.c.l.b16 %v36
  %v50 = vunpack.c.l.b16 %v37
  %v51 = vunpack.c.l.b16 %v38
  %v52 = vpack.c.b16 %v49, %v48
  %v53 = vpack.c.b16 %v51, %v50
  %vm56 = vcmask 261120
  %v58 = vsel %vm56, %v43, 0
  %60 = vmatprep.subr.bf16.mxu0 0
  %61 = vmatpush1.bf16.msra.mxu0 %v52
  %62 = vmatprep.subr.bf16.mxu0 0
  %63 = vmatpush1.bf16.msra.mxu0 %v53
  %64 = vmatprep.subr.bf16.mxu0 0
  %65 = vmatpush1.bf16.msra.mxu0 0
  %66 = vmatprep.subr.bf16.mxu0 0
  %67 = vmatpush1.bf16.msra.mxu0 0
  %68 = vmatprep.subr.bf16.mxu0 0
  %69 = vmatpush1.bf16.msra.mxu0 0
  %70 = vmatprep.subr.bf16.mxu0 0
  %71 = vmatpush1.bf16.msra.mxu0 0
  %72 = vmatprep.subr.bf16.mxu0 0
  %73 = vmatpush1.bf16.msra.mxu0 0
  %74 = vmatprep.subr.bf16.mxu0 0
  %75 = vmatpush1.bf16.msra.mxu0 0
  %76 = vmatprep.subr.bf16.mxu0 0
  %77 = vmatpush1.bf16.msra.mxu0 0
  %78 = vmatprep.subr.bf16.mxu0 0
  %79 = vmatpush1.bf16.msra.mxu0 0
  %80 = vmatprep.subr.bf16.mxu0 0
  %81 = vmatpush1.bf16.msra.mxu0 0
  %82 = vmatprep.subr.bf16.mxu0 0
  %83 = vmatpush1.bf16.msra.mxu0 0
  %84 = vmatprep.subr.bf16.mxu0 0
  %85 = vmatpush1.bf16.msra.mxu0 0
  %86 = vmatprep.subr.bf16.mxu0 0
  %87 = vmatpush1.bf16.msra.mxu0 0
  %88 = vmatprep.subr.bf16.mxu0 0
  %89 = vmatpush1.bf16.msra.mxu0 0
  %90 = vmatprep.subr.bf16.mxu0 0
  %91 = vmatpush1.bf16.msra.mxu0 0
  %92 = vmatprep.mubr.bf16.mxu0 0
  %93 = vmatmul.mubr.bf16.gmra.mrb[0].mxu0 %v58
  %v94 = vpop.f32.mrb[0].mxu0
  %v95 = vadd.f32 0.0, %v94
  %v96 = vpop.f32.mrb[0].mxu0
  %v97 = vpop.f32.mrb[0].mxu0
  %v98 = vadd.f32 0.0, %v97
  %v99 = vpop.f32.mrb[0].mxu0
  %100 = vdwg.mxu0
  %v101 = vadd.f32 %v31, %v95
  %v102 = vadd.f32 %v32, %v98
  %103 = vst.msk [vmem:[#allocation2] sm:$0xff] %vm56, %v101
  %104 = vst.msk [vmem:[#allocation2 + $0x8] sm:$0xff] %vm56, %v102
  // Predicated region
  $region30: #{_lambda_.15} parent=0 // pred_check
    %p105 = pneg %p24
  $region31: #{_lambda_.15} parent=0 // pred_check_branch
    %107 = sbr.rel (%p105) target = $region33
  $region32: #{_lambda_.15} parent=0 // pred_region
    %v108 = vld [vmem:[#allocation2] sm:$0xff]
    %v109 = vld [vmem:[#allocation2 + $0x8] sm:$0xff]
    %v110 = vld [vmem:[%s2] sm:$0x1]
    %v112 = vlaneseq
    %v113 = vshrl.u32 %v112, 7
    %v114 = vsub.s32 0, %v113
    %v115 = vrot.slane %v110, %v114
    %v117 = vadd.f32 %v108, %v115
    %v118 = vadd.f32 %v109, %v115
    %v119 = vld [vmem:[%s3] sm:$0xf]
    %v120 = vld [vmem:[%s3 + $0x4] sm:$0xf]
    %v121 = vunpack.c.l.bf16 %v119
    %v122 = vunpack.c.l.bf16 %v120
    %v123 = vadd.f32 %v117, %v121
    %v124 = vadd.f32 %v118, %v122
    %v125 = vsel %vm56, %v123, 0.0
    %126 = vadd.xlane.f32.xlu0 %v125
    %v127 = vpop.xlane.xlu0 %126
    %v128 = vsel %vm56, %v124, 0.0
    %129 = vadd.xlane.f32.xlu0 %v128
    %v130 = vpop.xlane.xlu0 %129
    %v131 = vrcp.pop 32.0
    %v132 = vmul.f32 %v127, %v131
    %v133 = vmul.f32 %v130, %v131
    %v134 = vsub.f32 %v123, %v132
    %v135 = vsub.f32 %v124, %v133
    %v136 = vmul.f32 %v134, %v134
    %v137 = vmul.f32 %v135, %v135
    %v138 = vsel %vm56, %v136, 0.0
    %139 = vadd.xlane.f32.xlu0 %v138
    %v140 = vpop.xlane.xlu0 %139
    %v141 = vsel %vm56, %v137, 0.0
    %142 = vadd.xlane.f32.xlu0 %v141
    %v143 = vpop.xlane.xlu0 %142
    %v144 = vmul.f32 %v140, %v131
    %v145 = vmul.f32 %v143, %v131
    %v146 = vadd.f32 %v144, 1e-12
    %v147 = vadd.f32 %v145, 1e-12
    %v148 = vrsqrt.pop %v146
    %v149 = vrsqrt.pop %v147
    %v150 = vmul.f32 %v134, %v148
    %v151 = vmul.f32 %v135, %v149
    %v152 = vld [vmem:[%s4] sm:$0x1]
    %v154 = vlaneseq
    %v155 = vshrl.u32 %v154, 7
    %v156 = vsub.s32 0, %v155
    %v157 = vrot.slane %v152, %v156
    %v159 = vmul.f32 %v150, %v157
    %v160 = vmul.f32 %v151, %v157
    %v161 = vld [vmem:[%s5] sm:$0x1]
    %v163 = vlaneseq
    %v164 = vshrl.u32 %v163, 7
    %v165 = vsub.s32 0, %v164
    %v166 = vrot.slane %v161, %v165
    %v168 = vadd.f32 %v159, %v166
    %v169 = vadd.f32 %v160, %v166
    %v170 = vpack.c.bf16 %v169, %v168
    %v172 = vunpack.c.l.b16 %v170
    %v173 = vunpack.c.h.b16 %v170
    %v174 = vpack.c.b16 %v172, %v172
    %v175 = vpack.c.b16 %v173, %v173
    %vm178 = vcmask 257024
    %179 = vst.msk [vmem:[%s6] sm:$0xf] %vm178, %v174
    %180 = vst.msk [vmem:[%s6 + $0x4] sm:$0xf] %vm178, %v175
  $region33: #{_lambda_.15} parent=0 // pred_fallthru
    _
  // Predicated region
  $region34: #{_lambda_.15} parent=0 // pred_check
    _
  $region35: #{_lambda_.15} parent=0 // pred_check_branch
    %182 = sbr.rel (0) target = $region37
  $region36: #{_lambda_.15} parent=0 // pred_region
    _
  $region37: #{_lambda_.15} parent=0 // pred_fallthru
    _
  // Predicated region
  $region38: #{_lambda_.15} parent=0 // pred_check
    _
  $region39: #{_lambda_.15} parent=0 // pred_check_branch
    %184 = sbr.rel (0) target = $region41
  $region40: #{_lambda_.15} parent=0 // pred_region
    _
  $region41: #{_lambda_.15} parent=0 // pred_fallthru
    _

// kernel: _lambda_.14
$region0: #{_lambda_.14}
  #allocation0 [shape = 'u32[]', space=smem, size = 0x4, offset = 0x4, fixed_abs, tag = 'smem constant byte address 0x4 - core index']
  #allocation1 [shape = 'u32[144,128]{1,0:T(1,128)}', space=vmem, size = 0x12000, scoped, tag = 'internal scratch']
  %s0 = inlined_call_operand.vmem [shape: bf16[2,8,96], index: 0, kind: input, shape index: {}]
  %s1 = inlined_call_operand.vmem [shape: f32[2,1,8], index: 1, kind: input, shape index: {}]
  %s2 = inlined_call_operand.vmem [shape: bf16[2,8,32], index: 2, kind: output, shape index: {}]
  %s3 = sld [smem:[#allocation0]]
  $region41: #{_lambda_.14} parent=0
    _
  %s5 = ssub.s32 1, %s3
  %s6 = scalar_select 0, %s5, %s3
  loop: start=0, step=1, limit=4
  $region2: #{_lambda_.14} parent=0 // loop_pre_header
    _
  $region3: #{_lambda_.14} parent=0 // loop_header
    %s8 = sphi 0, %s12
    %p9 = scmp.ge.s32.totalorder %s8, 4
    %s15 = sphi 0, %s27
    %s16 = sphi 0, %s23
    %s17 = sphi 0, %s15
    %s18 = sphi 0, %s16
    %s19 = sphi 0, %s17
    %s20 = sphi 0, %s18
    %s30 = sphi 0, %s32
    %s33 = sphi 0, %s30
    %s34 = sphi 0, %s33
    %s50 = sphi 0, %s34
    %s56 = sphi 0, %s58
    %s59 = sphi 0, %s56
    %s60 = sphi 0, %s59
    %s76 = sphi 0, %s60
    %s84 = sphi 0, %s86
    %s87 = sphi 0, %s84
    %s88 = sphi 0, %s87
    %s104 = sphi 0, %s88
  $region4: #{_lambda_.14} parent=0 // loop_header_branch
    %11 = sbr.rel (%p9) target = $region8
  $region5: #{_lambda_.14} parent=0 // loop_body
    %s13 = ssub.s32 %s8, 1
    %s14 = ssub.s32 %s8, 2
    %s21 = sadd.s32 1, %s16
    %p22 = scmp.ge.s32.totalorder %s21, 1
    %s23 = scalar_select %p22, 0, %s21
    %s24 = sadd.s32 1, %s15
    %s25 = scalar_select %p22, %s24, %s15
    %p26 = scmp.ge.s32.totalorder %s25, 2
    %s27 = scalar_select %p26, 0, %s25
    %s28 = ssub.s32 %s15, %s27
    %p29 = scmp.eq.s32.totalorder %s28, 0
    %s31 = sadd.s32 %s30, 1
    %s32 = scalar_select %p29, %s30, %s31
    %p35 = pneg %p29
    %p36 = scmp.eq.s32.totalorder %s8, 1
    %p37 = por %p35, %p36
    %p38 = scmp.ne.s32.totalorder %s30, %s33
    %p39 = scmp.eq.s32.totalorder %s8, 0
    %p40 = por %p38, %p39
    %p41 = scmp.ne.s32.totalorder %s30, %s33
    %p42 = scmp.eq.s32.totalorder %s13, 1
    %p43 = por %p41, %p42
    %p44 = scmp.ne.s32.totalorder %s33, %s34
    %p45 = scmp.eq.s32.totalorder %s13, 0
    %p46 = por %p44, %p45
    %p47 = scmp.ne.s32.totalorder %s33, %s34
    %p48 = scmp.eq.s32.totalorder %s14, 1
    %p49 = por %p47, %p48
    %p51 = scmp.ne.s32.totalorder %s34, %s50
    %p52 = scmp.eq.s32.totalorder %s14, 0
    %p53 = por %p51, %p52
    %s54 = ssub.s32 %s15, %s27
    %p55 = scmp.eq.s32.totalorder %s54, 0
    %s57 = sadd.s32 %s56, 1
    %s58 = scalar_select %p55, %s56, %s57
    %p61 = pneg %p55
    %p62 = scmp.eq.s32.totalorder %s8, 1
    %p63 = por %p61, %p62
    %p64 = scmp.ne.s32.totalorder %s56, %s59
    %p65 = scmp.eq.s32.totalorder %s8, 0
    %p66 = por %p64, %p65
    %p67 = scmp.ne.s32.totalorder %s56, %s59
    %p68 = scmp.eq.s32.totalorder %s13, 1
    %p69 = por %p67, %p68
    %p70 = scmp.ne.s32.totalorder %s59, %s60
    %p71 = scmp.eq.s32.totalorder %s13, 0
    %p72 = por %p70, %p71
    %p73 = scmp.ne.s32.totalorder %s59, %s60
    %p74 = scmp.eq.s32.totalorder %s14, 1
    %p75 = por %p73, %p74
    %p77 = scmp.ne.s32.totalorder %s60, %s76
    %p78 = scmp.eq.s32.totalorder %s14, 0
    %p79 = por %p77, %p78
    %s80 = ssub.s32 %s15, %s27
    %s81 = ssub.s32 %s16, %s23
    %s82 = sor.u32 %s80, %s81
    %p83 = scmp.eq.s32.totalorder %s82, 0
    %s85 = sadd.s32 %s84, 1
    %s86 = scalar_select %p83, %s84, %s85
    %p89 = pneg %p83
    %p90 = scmp.eq.s32.totalorder %s8, 1
    %p91 = por %p89, %p90
    %p92 = scmp.ne.s32.totalorder %s84, %s87
    %p93 = scmp.eq.s32.totalorder %s8, 0
    %p94 = por %p92, %p93
    %p95 = scmp.ne.s32.totalorder %s84, %s87
    %p96 = scmp.eq.s32.totalorder %s13, 1
    %p97 = por %p95, %p96
    %p98 = scmp.ne.s32.totalorder %s87, %s88
    %p99 = scmp.eq.s32.totalorder %s13, 0
    %p100 = por %p98, %p99
    %p101 = scmp.ne.s32.totalorder %s87, %s88
    %p102 = scmp.eq.s32.totalorder %s14, 1
    %p103 = por %p101, %p102
    %p105 = scmp.ne.s32.totalorder %s88, %s104
    %p106 = scmp.eq.s32.totalorder %s14, 0
    %p107 = por %p105, %p106
    %p108 = scmp.le.s32.totalorder 1, %s8
    %p109 = scmp.lt.s32.totalorder %s8, 3
    %p110 = pnand %p108, %p109
    %p111 = pneg %p110
    // Predicated region
    $region9: #{_lambda_.14} parent=5 // pred_check
      _
    $region10: #{_lambda_.14} parent=5 // pred_check_branch
      %113 = sbr.rel (%p110) target = $region12
    $region11: #{_lambda_.14} parent=5 // pred_region
      %s114 = ssub.s32 %s8, 1
    $region12: #{_lambda_.14} parent=5 // pred_fallthru
      _
    %p115 = scmp.lt.s32.totalorder %s8, 2
    // Predicated region
    $region13: #{_lambda_.14} parent=5 // pred_check
      %p116 = pneg %p115
    $region14: #{_lambda_.14} parent=5 // pred_check_branch
      %118 = sbr.rel (%p116) target = $region16
    $region15: #{_lambda_.14} parent=5 // pred_region
      // Predicated region
      $region17: #{_lambda_.14} parent=15 // pred_check
        %p119 = pneg %p40
      $region18: #{_lambda_.14} parent=15 // pred_check_branch
        %121 = sbr.rel (%p119) target = $region20
      $region19: #{_lambda_.14} parent=15 // pred_region
        %p122 = scmp.lt.s32.totalorder %s15, 1
        %s123 = scalar_select %p122, %s15, 1
        %s124 = smul.addr %s123, 4
        %s125 = scalar_lea.vmem %s0, %s124
      $region20: #{_lambda_.14} parent=15 // pred_fallthru
        _
      // Predicated region
      $region21: #{_lambda_.14} parent=15 // pred_check
        %p126 = pneg %p66
      $region22: #{_lambda_.14} parent=15 // pred_check_branch
        %128 = sbr.rel (%p126) target = $region24
      $region23: #{_lambda_.14} parent=15 // pred_region
        %p129 = scmp.lt.s32.totalorder %s15, 1
        %s130 = scalar_select %p129, %s15, 1
        %s131 = scalar_lea.vmem %s1, %s130
      $region24: #{_lambda_.14} parent=15 // pred_fallthru
        _
    $region16: #{_lambda_.14} parent=5 // pred_fallthru
      _
    %p132 = scmp.le.s32.totalorder 1, %s8
    %p133 = scmp.lt.s32.totalorder %s8, 3
    %p134 = pnand %p132, %p133
    %p135 = pneg %p134
    // Predicated region
    $region25: #{_lambda_.14} parent=5 // pred_check
      _
    $region26: #{_lambda_.14} parent=5 // pred_check_branch
      %137 = sbr.rel (%p134) target = $region28
    $region27: #{_lambda_.14} parent=5 // pred_region
      %s138 = ssub.s32 %s8, 1
      %p139 = scmp.lt.s32.totalorder %s17, 1
      %s140 = scalar_select %p139, %s17, 1
      %s141 = smul.addr %s140, 4
      %s142 = scalar_lea.vmem %s0, %s141
      %p143 = pneg %p46
      %p144 = pneg %p43
      %p145 = scmp.lt.s32.totalorder %s17, 1
      %s146 = scalar_select %p145, %s17, 1
      %s147 = scalar_lea.vmem %s1, %s146
      %p148 = pneg %p72
      %p149 = pneg %p69
      %p150 = pneg %p100
      %p151 = pneg %p97
      %p152 = scmp.lt.s32.totalorder %s17, 1
      %s153 = scalar_select %p152, %s17, 1
      %p154 = scmp.lt.s32.totalorder %s18, 0
      %s155 = scalar_select %p154, %s18, 0
      %s156 = sadd.s32 %s155, %s153
      %s157 = smul.addr %s156, 4
      %s158 = scalar_lea.vmem %s2, %s157
      %p159 = scmp.lt.s32.totalorder %s17, 1
      %s160 = scalar_select %p159, %s17, 1
      %s161 = smul.addr %s160, 4
      %s162 = scalar_lea.vmem %s0, %s161
      %p163 = scmp.lt.s32.totalorder %s17, 1
      %s164 = scalar_select %p163, %s17, 1
      %s165 = scalar_lea.vmem %s1, %s164
      %p166 = scmp.lt.s32.totalorder %s17, 1
      %s167 = scalar_select %p166, %s17, 1
      %p168 = scmp.lt.s32.totalorder %s18, 0
      %s169 = scalar_select %p168, %s18, 0
      %s170 = sadd.s32 %s169, %s167
      %s171 = smul.addr %s170, 4
      %s172 = scalar_lea.vmem %s2, %s171
      %s174 = smul.u32 %s18, 8
      %v175 = vld [vmem:[%s165] sm:$0x1]
      %s176 = sshra.s32 %s174, 3
      %s177 = sand.u32 %s174, 7
      %s178 = smul.addr %s176, 4
      %s179 = scalar_lea.vmem %s162, %s178
      %v180 = vld [vmem:[%s179] sm:$0xf]
      %v181 = vld [vmem:[%s162] sm:$0xf]
      %v183 = vunpack.c.l.b16 %v181
      %v184 = vpack.c.b16 %v183, %v183
      %185 = vrot.lane.b32.xlu0 %v184, 96
      %v186 = vpop.permute.xlu0 %185
      %vm187 = vcmask 64512
      %v189 = vsel %vm187, %v180, 0
      %v192 = vsel %vm187, %v186, 0
      %194 = vmatprep.subr.bf16.mxu0 0
      %195 = vmatpush1.bf16.xpose.msra.mxu0 %v192
      %196 = vmatprep.subr.bf16.mxu0 0
      %197 = vmatpush1.bf16.xpose.msra.mxu0 0
      %198 = vmatprep.subr.bf16.mxu0 0
      %199 = vmatpush1.bf16.xpose.msra.mxu0 0
      %200 = vmatprep.subr.bf16.mxu0 0
      %201 = vmatpush1.bf16.xpose.msra.mxu0 0
      %202 = vmatprep.subr.bf16.mxu0 0
      %203 = vmatpush1.bf16.xpose.msra.mxu0 0
      %204 = vmatprep.subr.bf16.mxu0 0
      %205 = vmatpush1.bf16.xpose.msra.mxu0 0
      %206 = vmatprep.subr.bf16.mxu0 0
      %207 = vmatpush1.bf16.xpose.msra.mxu0 0
      %208 = vmatprep.subr.bf16.mxu0 0
      %209 = vmatpush1.bf16.xpose.msra.mxu0 0
      %210 = vmatprep.subr.bf16.mxu0 0
      %211 = vmatpush1.bf16.xpose.msra.mxu0 0
      %212 = vmatprep.subr.bf16.mxu0 0
      %213 = vmatpush1.bf16.xpose.msra.mxu0 0
      %214 = vmatprep.subr.bf16.mxu0 0
      %215 = vmatpush1.bf16.xpose.msra.mxu0 0
      %216 = vmatprep.subr.bf16.mxu0 0
      %217 = vmatpush1.bf16.xpose.msra.mxu0 0
      %218 = vmatprep.subr.bf16.mxu0 0
      %219 = vmatpush1.bf16.xpose.msra.mxu0 0
      %220 = vmatprep.subr.bf16.mxu0 0
      %221 = vmatpush1.bf16.xpose.msra.mxu0 0
      %222 = vmatprep.subr.bf16.mxu0 0
      %223 = vmatpush1.bf16.xpose.msra.mxu0 0
      %224 = vmatprep.subr.bf16.mxu0 0
      %225 = vmatpush1.bf16.xpose.msra.mxu0 0
      %226 = vmatprep.mubr.bf16.mxu0 0
      %227 = vmatmul.mubr.bf16.gmra.mrb[0].mxu0 %v189
      %v228 = vpop.f32.mrb[0].mxu0
      %v229 = vadd.f32 0.0, %v228
      %v230 = vpop.f32.mrb[0].mxu0
      %v231 = vpop.f32.mrb[0].mxu0
      %v232 = vpop.f32.mrb[0].mxu0
      %233 = vdwg.mxu0
      %v234 = vmul.f32 %v229, 0.35355338
      %v236 = vlaneseq
      %v237 = vshrl.u32 %v236, 7
      %v238 = vsub.s32 0, %v237
      %v239 = vrot.slane %v175, %v238
      %v241 = vadd.f32 %v234, %v239
      %v242 = vsel %vm187, %v241, -inf
      %243 = vmax.xlane.f32.xlu0 %v242
      %v244 = vpop.xlane.xlu0 %243
      %v245 = vsub.f32 %v241, %v244
      %v246 = vmul.f32 %v245, 1.442695
      %v247 = vpow.pop %v246
      %v248 = vsel %vm187, %v247, 0.0
      %249 = vadd.xlane.f32.xlu0 %v248
      %v250 = vpop.xlane.xlu0 %249
      %v251 = vrcp.pop %v250
      %v252 = vmul.f32 %v247, %v251
      %v253 = vpack.c.bf16 %v252, %v252
      %254 = vrot.lane.b32.xlu0 %v184, 64
      %v255 = vpop.permute.xlu0 %254
      %v257 = vsel %vm187, %v253, 0
      %vm259 = vcmask 1043456
      %v261 = vsel %vm259, %v255, 0
      %263 = vmatprep.subr.bf16.mxu0 0
      %264 = vmatpush1.bf16.msra.mxu0 %v261
      %265 = vmatprep.subr.bf16.mxu0 0
      %266 = vmatpush1.bf16.msra.mxu0 0
      %267 = vmatprep.subr.bf16.mxu0 0
      %268 = vmatpush1.bf16.msra.mxu0 0
      %269 = vmatprep.subr.bf16.mxu0 0
      %270 = vmatpush1.bf16.msra.mxu0 0
      %271 = vmatprep.subr.bf16.mxu0 0
      %272 = vmatpush1.bf16.msra.mxu0 0
      %273 = vmatprep.subr.bf16.mxu0 0
      %274 = vmatpush1.bf16.msra.mxu0 0
      %275 = vmatprep.subr.bf16.mxu0 0
      %276 = vmatpush1.bf16.msra.mxu0 0
      %277 = vmatprep.subr.bf16.mxu0 0
      %278 = vmatpush1.bf16.msra.mxu0 0
      %279 = vmatprep.subr.bf16.mxu0 0
      %280 = vmatpush1.bf16.msra.mxu0 0
      %281 = vmatprep.subr.bf16.mxu0 0
      %282 = vmatpush1.bf16.msra.mxu0 0
      %283 = vmatprep.subr.bf16.mxu0 0
      %284 = vmatpush1.bf16.msra.mxu0 0
      %285 = vmatprep.subr.bf16.mxu0 0
      %286 = vmatpush1.bf16.msra.mxu0 0
      %287 = vmatprep.subr.bf16.mxu0 0
      %288 = vmatpush1.bf16.msra.mxu0 0
      %289 = vmatprep.subr.bf16.mxu0 0
      %290 = vmatpush1.bf16.msra.mxu0 0
      %291 = vmatprep.subr.bf16.mxu0 0
      %292 = vmatpush1.bf16.msra.mxu0 0
      %293 = vmatprep.subr.bf16.mxu0 0
      %294 = vmatpush1.bf16.msra.mxu0 0
      %295 = vmatprep.mubr.bf16.mxu0 0
      %296 = vmatmul.mubr.bf16.gmra.mrb[0].mxu0 %v257
      %v297 = vpop.f32.mrb[0].mxu0
      %v298 = vadd.f32 0.0, %v297
      %v299 = vpop.f32.mrb[0].mxu0
      %v300 = vpop.f32.mrb[0].mxu0
      %v301 = vpop.f32.mrb[0].mxu0
      %302 = vdwg.mxu0
      %v303 = vpack.c.bf16 %v298, %v298
      %vm304 = vcmask 60416
      %305 = vst.msk [vmem:[%s172] sm:$0xf] %vm304, %v303
      %v306 = vld [vmem:[%s179] sm:$0xf]
      %v307 = vld [vmem:[%s162] sm:$0xf]
      %v309 = vunpack.c.l.b16 %v306
      %v310 = vpack.c.b16 %v309, %v309
      %311 = vrot.lane.b32.xlu0 %v310, 120
      %v312 = vpop.permute.xlu0 %311
      %v314 = vunpack.c.l.b16 %v307
      %v315 = vpack.c.b16 %v314, %v314
      %316 = vrot.lane.b32.xlu0 %v315, 88
      %v317 = vpop.permute.xlu0 %316
      %v319 = vsel %vm187, %v312, 0
      %v322 = vsel %vm187, %v317, 0
      %324 = vmatprep.subr.bf16.mxu0 0
      %325 = vmatpush1.bf16.xpose.msra.mxu0 %v322
      %326 = vmatprep.subr.bf16.mxu0 0
      %327 = vmatpush1.bf16.xpose.msra.mxu0 0
      %328 = vmatprep.subr.bf16.mxu0 0
      %329 = vmatpush1.bf16.xpose.msra.mxu0 0
      %330 = vmatprep.subr.bf16.mxu0 0
      %331 = vmatpush1.bf16.xpose.msra.mxu0 0
      %332 = vmatprep.subr.bf16.mxu0 0
      %333 = vmatpush1.bf16.xpose.msra.mxu0 0
      %334 = vmatprep.subr.bf16.mxu0 0
      %335 = vmatpush1.bf16.xpose.msra.mxu0 0
      %336 = vmatprep.subr.bf16.mxu0 0
      %337 = vmatpush1.bf16.xpose.msra.mxu0 0
      %338 = vmatprep.subr.bf16.mxu0 0
      %339 = vmatpush1.bf16.xpose.msra.mxu0 0
      %340 = vmatprep.subr.bf16.mxu0 0
      %341 = vmatpush1.bf16.xpose.msra.mxu0 0
      %342 = vmatprep.subr.bf16.mxu0 0
      %343 = vmatpush1.bf16.xpose.msra.mxu0 0
      %344 = vmatprep.subr.bf16.mxu0 0
      %345 = vmatpush1.bf16.xpose.msra.mxu0 0
      %346 = vmatprep.subr.bf16.mxu0 0
      %347 = vmatpush1.bf16.xpose.msra.mxu0 0
      %348 = vmatprep.subr.bf16.mxu0 0
      %349 = vmatpush1.bf16.xpose.msra.mxu0 0
      %350 = vmatprep.subr.bf16.mxu0 0
      %351 = vmatpush1.bf16.xpose.msra.mxu0 0
      %352 = vmatprep.subr.bf16.mxu0 0
      %353 = vmatpush1.bf16.xpose.msra.mxu0 0
      %354 = vmatprep.subr.bf16.mxu0 0
      %355 = vmatpush1.bf16.xpose.msra.mxu0 0
      %356 = vmatprep.mubr.bf16.mxu0 0
      %357 = vmatmul.mubr.bf16.gmra.mrb[0].mxu0 %v319
      %v358 = vpop.f32.mrb[0].mxu0
      %v359 = vadd.f32 0.0, %v358
      %v360 = vpop.f32.mrb[0].mxu0
      %v361 = vpop.f32.mrb[0].mxu0
      %v362 = vpop.f32.mrb[0].mxu0
      %363 = vdwg.mxu0
      %v364 = vmul.f32 %v359, 0.35355338
      %v365 = vadd.f32 %v364, %v239
      %v366 = vsel %vm187, %v365, -inf
      %367 = vmax.xlane.f32.xlu0 %v366
      %v368 = vpop.xlane.xlu0 %367
      %v369 = vsub.f32 %v365, %v368
      %v370 = vmul.f32 %v369, 1.442695
      %v371 = vpow.pop %v370
      %v372 = vsel %vm187, %v371, 0.0
      %373 = vadd.xlane.f32.xlu0 %v372
      %v374 = vpop.xlane.xlu0 %373
      %v375 = vrcp.pop %v374
      %v376 = vmul.f32 %v371, %v375
      %v377 = vpack.c.bf16 %v376, %v376
      %378 = vrot.lane.b32.xlu0 %v315, 56
      %v379 = vpop.permute.xlu0 %378
      %v381 = vsel %vm187, %v377, 0
      %v384 = vsel %vm259, %v379, 0
      %386 = vmatprep.subr.bf16.mxu0 0
      %387 = vmatpush1.bf16.msra.mxu0 %v384
      %388 = vmatprep.subr.bf16.mxu0 0
      %389 = vmatpush1.bf16.msra.mxu0 0
      %390 = vmatprep.subr.bf16.mxu0 0
      %391 = vmatpush1.bf16.msra.mxu0 0
      %392 = vmatprep.subr.bf16.mxu0 0
      %393 = vmatpush1.bf16.msra.mxu0 0
      %394 = vmatprep.subr.bf16.mxu0 0
      %395 = vmatpush1.bf16.msra.mxu0 0
      %396 = vmatprep.subr.bf16.mxu0 0
      %397 = vmatpush1.bf16.msra.mxu0 0
      %398 = vmatprep.subr.bf16.mxu0 0
      %399 = vmatpush1.bf16.msra.mxu0 0
      %400 = vmatprep.subr.bf16.mxu0 0
      %401 = vmatpush1.bf16.msra.mxu0 0
      %402 = vmatprep.subr.bf16.mxu0 0
      %403 = vmatpush1.bf16.msra.mxu0 0
      %404 = vmatprep.subr.bf16.mxu0 0
      %405 = vmatpush1.bf16.msra.mxu0 0
      %406 = vmatprep.subr.bf16.mxu0 0
      %407 = vmatpush1.bf16.msra.mxu0 0
      %408 = vmatprep.subr.bf16.mxu0 0
      %409 = vmatpush1.bf16.msra.mxu0 0
      %410 = vmatprep.subr.bf16.mxu0 0
      %411 = vmatpush1.bf16.msra.mxu0 0
      %412 = vmatprep.subr.bf16.mxu0 0
      %413 = vmatpush1.bf16.msra.mxu0 0
      %414 = vmatprep.subr.bf16.mxu0 0
      %415 = vmatpush1.bf16.msra.mxu0 0
      %416 = vmatprep.subr.bf16.mxu0 0
      %417 = vmatpush1.bf16.msra.mxu0 0
      %418 = vmatprep.mubr.bf16.mxu0 0
      %419 = vmatmul.mubr.bf16.gmra.mrb[0].mxu0 %v381
      %v420 = vpop.f32.mrb[0].mxu0
      %v421 = vadd.f32 0.0, %v420
      %v422 = vpop.f32.mrb[0].mxu0
      %v423 = vpop.f32.mrb[0].mxu0
      %v424 = vpop.f32.mrb[0].mxu0
      %425 = vdwg.mxu0
      %v426 = vpack.c.bf16 %v421, %v421
      %v428 = vunpack.c.l.b16 %v426
      %v429 = vpack.c.b16 %v428, %v428
      %430 = vrot.lane.b32.xlu0 %v429, 8
      %v431 = vpop.permute.xlu0 %430
      %vm433 = vcmask 126016
      %434 = vst.msk [vmem:[%s172] sm:$0xf] %vm433, %v431
      %v435 = vld [vmem:[%s179] sm:$0xf]
      %v436 = vld [vmem:[%s162] sm:$0xf]
      %v438 = vunpack.c.l.b16 %v435
      %v439 = vpack.c.b16 %v438, %v438
      %440 = vrot.lane.b32.xlu0 %v439, 112
      %v441 = vpop.permute.xlu0 %440
      %v443 = vunpack.c.l.b16 %v436
      %v444 = vpack.c.b16 %v443, %v443
      %445 = vrot.lane.b32.xlu0 %v444, 80
      %v446 = vpop.permute.xlu0 %445
      %v448 = vsel %vm187, %v441, 0
      %v451 = vsel %vm187, %v446, 0
      %453 = vmatprep.subr.bf16.mxu0 0
      %454 = vmatpush1.bf16.xpose.msra.mxu0 %v451
      %455 = vmatprep.subr.bf16.mxu0 0
      %456 = vmatpush1.bf16.xpose.msra.mxu0 0
      %457 = vmatprep.subr.bf16.mxu0 0
      %458 = vmatpush1.bf16.xpose.msra.mxu0 0
      %459 = vmatprep.subr.bf16.mxu0 0
      %460 = vmatpush1.bf16.xpose.msra.mxu0 0
      %461 = vmatprep.subr.bf16.mxu0 0
      %462 = vmatpush1.bf16.xpose.msra.mxu0 0
      %463 = vmatprep.subr.bf16.mxu0 0
      %464 = vmatpush1.bf16.xpose.msra.mxu0 0
      %465 = vmatprep.subr.bf16.mxu0 0
      %466 = vmatpush1.bf16.xpose.msra.mxu0 0
      %467 = vmatprep.subr.bf16.mxu0 0
      %468 = vmatpush1.bf16.xpose.msra.mxu0 0
      %469 = vmatprep.subr.bf16.mxu0 0
      %470 = vmatpush1.bf16.xpose.msra.mxu0 0
      %471 = vmatprep.subr.bf16.mxu0 0
      %472 = vmatpush1.bf16.xpose.msra.mxu0 0
      %473 = vmatprep.subr.bf16.mxu0 0
      %474 = vmatpush1.bf16.xpose.msra.mxu0 0
      %475 = vmatprep.subr.bf16.mxu0 0
      %476 = vmatpush1.bf16.xpose.msra.mxu0 0
      %477 = vmatprep.subr.bf16.mxu0 0
      %478 = vmatpush1.bf16.xpose.msra.mxu0 0
      %479 = vmatprep.subr.bf16.mxu0 0
      %480 = vmatpush1.bf16.xpose.msra.mxu0 0
      %481 = vmatprep.subr.bf16.mxu0 0
      %482 = vmatpush1.bf16.xpose.msra.mxu0 0
      %483 = vmatprep.subr.bf16.mxu0 0
      %484 = vmatpush1.bf16.xpose.msra.mxu0 0
      %485 = vmatprep.mubr.bf16.mxu0 0
      %486 = vmatmul.mubr.bf16.gmra.mrb[0].mxu0 %v448
      %v487 = vpop.f32.mrb[0].mxu0
      %v488 = vadd.f32 0.0, %v487
      %v489 = vpop.f32.mrb[0].mxu0
      %v490 = vpop.f32.mrb[0].mxu0
      %v491 = vpop.f32.mrb[0].mxu0
      %492 = vdwg.mxu0
      %v493 = vmul.f32 %v488, 0.35355338
      %v494 = vadd.f32 %v493, %v239
      %v495 = vsel %vm187, %v494, -inf
      %496 = vmax.xlane.f32.xlu0 %v495
      %v497 = vpop.xlane.xlu0 %496
      %v498 = vsub.f32 %v494, %v497
      %v499 = vmul.f32 %v498, 1.442695
      %v500 = vpow.pop %v499
      %v501 = vsel %vm187, %v500, 0.0
      %502 = vadd.xlane.f32.xlu0 %v501
      %v503 = vpop.xlane.xlu0 %502
      %v504 = vrcp.pop %v503
      %v505 = vmul.f32 %v500, %v504
      %v506 = vpack.c.bf16 %v505, %v505
      %507 = vrot.lane.b32.xlu0 %v444, 48
      %v508 = vpop.permute.xlu0 %507
      %v510 = vsel %vm187, %v506, 0
      %v513 = vsel %vm259, %v508, 0
      %515 = vmatprep.subr.bf16.mxu0 0
      %516 = vmatpush1.bf16.msra.mxu0 %v513
      %517 = vmatprep.subr.bf16.mxu0 0
      %518 = vmatpush1.bf16.msra.mxu0 0
      %519 = vmatprep.subr.bf16.mxu0 0
      %520 = vmatpush1.bf16.msra.mxu0 0
      %521 = vmatprep.subr.bf16.mxu0 0
      %522 = vmatpush1.bf16.msra.mxu0 0
      %523 = vmatprep.subr.bf16.mxu0 0
      %524 = vmatpush1.bf16.msra.mxu0 0
      %525 = vmatprep.subr.bf16.mxu0 0
      %526 = vmatpush1.bf16.msra.mxu0 0
      %527 = vmatprep.subr.bf16.mxu0 0
      %528 = vmatpush1.bf16.msra.mxu0 0
      %529 = vmatprep.subr.bf16.mxu0 0
      %530 = vmatpush1.bf16.msra.mxu0 0
      %531 = vmatprep.subr.bf16.mxu0 0
      %532 = vmatpush1.bf16.msra.mxu0 0
      %533 = vmatprep.subr.bf16.mxu0 0
      %534 = vmatpush1.bf16.msra.mxu0 0
      %535 = vmatprep.subr.bf16.mxu0 0
      %536 = vmatpush1.bf16.msra.mxu0 0
      %537 = vmatprep.subr.bf16.mxu0 0
      %538 = vmatpush1.bf16.msra.mxu0 0
      %539 = vmatprep.subr.bf16.mxu0 0
      %540 = vmatpush1.bf16.msra.mxu0 0
      %541 = vmatprep.subr.bf16.mxu0 0
      %542 = vmatpush1.bf16.msra.mxu0 0
      %543 = vmatprep.subr.bf16.mxu0 0
      %544 = vmatpush1.bf16.msra.mxu0 0
      %545 = vmatprep.subr.bf16.mxu0 0
      %546 = vmatpush1.bf16.msra.mxu0 0
      %547 = vmatprep.mubr.bf16.mxu0 0
      %548 = vmatmul.mubr.bf16.gmra.mrb[0].mxu0 %v510
      %v549 = vpop.f32.mrb[0].mxu0
      %v550 = vadd.f32 0.0, %v549
      %v551 = vpop.f32.mrb[0].mxu0
      %v552 = vpop.f32.mrb[0].mxu0
      %v553 = vpop.f32.mrb[0].mxu0
      %554 = vdwg.mxu0
      %v555 = vpack.c.bf16 %v550, %v550
      %v557 = vunpack.c.l.b16 %v555
      %v558 = vpack.c.b16 %v557, %v557
      %559 = vrot.lane.b32.xlu0 %v558, 16
      %v560 = vpop.permute.xlu0 %559
      %vm562 = vcmask 191616
      %563 = vst.msk [vmem:[%s172] sm:$0xf] %vm562, %v560
      %v564 = vld [vmem:[%s179] sm:$0xf]
      %v565 = vld [vmem:[%s162] sm:$0xf]
      %v567 = vunpack.c.l.b16 %v564
      %v568 = vpack.c.b16 %v567, %v567
      %569 = vrot.lane.b32.xlu0 %v568, 104
      %v570 = vpop.permute.xlu0 %569
      %v572 = vunpack.c.l.b16 %v565
      %v573 = vpack.c.b16 %v572, %v572
      %574 = vrot.lane.b32.xlu0 %v573, 72
      %v575 = vpop.permute.xlu0 %574
      %v577 = vsel %vm187, %v570, 0
      %v580 = vsel %vm187, %v575, 0
      %582 = vmatprep.subr.bf16.mxu0 0
      %583 = vmatpush1.bf16.xpose.msra.mxu0 %v580
      %584 = vmatprep.subr.bf16.mxu0 0
      %585 = vmatpush1.bf16.xpose.msra.mxu0 0
      %586 = vmatprep.subr.bf16.mxu0 0
      %587 = vmatpush1.bf16.xpose.msra.mxu0 0
      %588 = vmatprep.subr.bf16.mxu0 0
      %589 = vmatpush1.bf16.xpose.msra.mxu0 0
      %590 = vmatprep.subr.bf16.mxu0 0
      %591 = vmatpush1.bf16.xpose.msra.mxu0 0
      %592 = vmatprep.subr.bf16.mxu0 0
      %593 = vmatpush1.bf16.xpose.msra.mxu0 0
      %594 = vmatprep.subr.bf16.mxu0 0
      %595 = vmatpush1.bf16.xpose.msra.mxu0 0
      %596 = vmatprep.subr.bf16.mxu0 0
      %597 = vmatpush1.bf16.xpose.msra.mxu0 0
      %598 = vmatprep.subr.bf16.mxu0 0
      %599 = vmatpush1.bf16.xpose.msra.mxu0 0
      %600 = vmatprep.subr.bf16.mxu0 0
      %601 = vmatpush1.bf16.xpose.msra.mxu0 0
      %602 = vmatprep.subr.bf16.mxu0 0
      %603 = vmatpush1.bf16.xpose.msra.mxu0 0
      %604 = vmatprep.subr.bf16.mxu0 0
      %605 = vmatpush1.bf16.xpose.msra.mxu0 0
      %606 = vmatprep.subr.bf16.mxu0 0
      %607 = vmatpush1.bf16.xpose.msra.mxu0 0
      %608 = vmatprep.subr.bf16.mxu0 0
      %609 = vmatpush1.bf16.xpose.msra.mxu0 0
      %610 = vmatprep.subr.bf16.mxu0 0
      %611 = vmatpush1.bf16.xpose.msra.mxu0 0
      %612 = vmatprep.subr.bf16.mxu0 0
      %613 = vmatpush1.bf16.xpose.msra.mxu0 0
      %614 = vmatprep.mubr.bf16.mxu0 0
      %615 = vmatmul.mubr.bf16.gmra.mrb[0].mxu0 %v577
      %v616 = vpop.f32.mrb[0].mxu0
      %v617 = vadd.f32 0.0, %v616
      %v618 = vpop.f32.mrb[0].mxu0
      %v619 = vpop.f32.mrb[0].mxu0
      %v620 = vpop.f32.mrb[0].mxu0
      %621 = vdwg.mxu0
      %v622 = vmul.f32 %v617, 0.35355338
      %v623 = vadd.f32 %v622, %v239
      %v624 = vsel %vm187, %v623, -inf
      %625 = vmax.xlane.f32.xlu0 %v624
      %v626 = vpop.xlane.xlu0 %625
      %v627 = vsub.f32 %v623, %v626
      %v628 = vmul.f32 %v627, 1.442695
      %v629 = vpow.pop %v628
      %v630 = vsel %vm187, %v629, 0.0
      %631 = vadd.xlane.f32.xlu0 %v630
      %v632 = vpop.xlane.xlu0 %631
      %v633 = vrcp.pop %v632
      %v634 = vmul.f32 %v629, %v633
      %v635 = vpack.c.bf16 %v634, %v634
      %636 = vrot.lane.b32.xlu0 %v573, 40
      %v637 = vpop.permute.xlu0 %636
      %v639 = vsel %vm187, %v635, 0
      %v642 = vsel %vm259, %v637, 0
      %644 = vmatprep.subr.bf16.mxu0 0
      %645 = vmatpush1.bf16.msra.mxu0 %v642
      %646 = vmatprep.subr.bf16.mxu0 0
      %647 = vmatpush1.bf16.msra.mxu0 0
      %648 = vmatprep.subr.bf16.mxu0 0
      %649 = vmatpush1.bf16.msra.mxu0 0
      %650 = vmatprep.subr.bf16.mxu0 0
      %651 = vmatpush1.bf16.msra.mxu0 0
      %652 = vmatprep.subr.bf16.mxu0 0
      %653 = vmatpush1.bf16.msra.mxu0 0
      %654 = vmatprep.subr.bf16.mxu0 0
      %655 = vmatpush1.bf16.msra.mxu0 0
      %656 = vmatprep.subr.bf16.mxu0 0
      %657 = vmatpush1.bf16.msra.mxu0 0
      %658 = vmatprep.subr.bf16.mxu0 0
      %659 = vmatpush1.bf16.msra.mxu0 0
      %660 = vmatprep.subr.bf16.mxu0 0
      %661 = vmatpush1.bf16.msra.mxu0 0
      %662 = vmatprep.subr.bf16.mxu0 0
      %663 = vmatpush1.bf16.msra.mxu0 0
      %664 = vmatprep.subr.bf16.mxu0 0
      %665 = vmatpush1.bf16.msra.mxu0 0
      %666 = vmatprep.subr.bf16.mxu0 0
      %667 = vmatpush1.bf16.msra.mxu0 0
      %668 = vmatprep.subr.bf16.mxu0 0
      %669 = vmatpush1.bf16.msra.mxu0 0
      %670 = vmatprep.subr.bf16.mxu0 0
      %671 = vmatpush1.bf16.msra.mxu0 0
      %672 = vmatprep.subr.bf16.mxu0 0
      %673 = vmatpush1.bf16.msra.mxu0 0
      %674 = vmatprep.subr.bf16.mxu0 0
      %675 = vmatpush1.bf16.msra.mxu0 0
      %676 = vmatprep.mubr.bf16.mxu0 0
      %677 = vmatmul.mubr.bf16.gmra.mrb[0].mxu0 %v639
      %v678 = vpop.f32.mrb[0].mxu0
      %v679 = vadd.f32 0.0, %v678
      %v680 = vpop.f32.mrb[0].mxu0
      %v681 = vpop.f32.mrb[0].mxu0
      %v682 = vpop.f32.mrb[0].mxu0
      %683 = vdwg.mxu0
      %v684 = vpack.c.bf16 %v679, %v679
      %v686 = vunpack.c.l.b16 %v684
      %v687 = vpack.c.b16 %v686, %v686
      %688 = vrot.lane.b32.xlu0 %v687, 24
      %v689 = vpop.permute.xlu0 %688
      %vm691 = vcmask 257216
      %692 = vst.msk [vmem:[%s172] sm:$0xf] %vm691, %v689
      %p693 = scmp.lt.s32.totalorder %s17, 1
      %s694 = scalar_select %p693, %s17, 1
      %p695 = scmp.lt.s32.totalorder %s18, 0
      %s696 = scalar_select %p695, %s18, 0
      %s697 = sadd.s32 %s696, %s694
      %s698 = smul.addr %s697, 4
      %s699 = scalar_lea.vmem %s2, %s698
      // Predicated region
      $region29: #{_lambda_.14} parent=27 // pred_check
        %p700 = pneg %p97
      $region30: #{_lambda_.14} parent=27 // pred_check_branch
        %702 = sbr.rel (%p700) target = $region32
      $region31: #{_lambda_.14} parent=27 // pred_region
        _
      $region32: #{_lambda_.14} parent=27 // pred_fallthru
        _
    $region28: #{_lambda_.14} parent=5 // pred_fallthru
      _
    %p703 = scmp.le.s32.totalorder 2, %s8
    // Predicated region
    $region33: #{_lambda_.14} parent=5 // pred_check
      %p704 = pneg %p703
    $region34: #{_lambda_.14} parent=5 // pred_check_branch
      %706 = sbr.rel (%p704) target = $region36
    $region35: #{_lambda_.14} parent=5 // pred_region
      %s707 = ssub.s32 %s8, 2
      // Predicated region
      $region37: #{_lambda_.14} parent=35 // pred_check
        %p708 = pneg %p103
      $region38: #{_lambda_.14} parent=35 // pred_check_branch
        %710 = sbr.rel (%p708) target = $region40
      $region39: #{_lambda_.14} parent=35 // pred_region
        %p711 = scmp.lt.s32.totalorder %s19, 1
        %s712 = scalar_select %p711, %s19, 1
        %p713 = scmp.lt.s32.totalorder %s20, 0
        %s714 = scalar_select %p713, %s20, 0
        %s715 = sadd.s32 %s714, %s712
        %s716 = smul.addr %s715, 4
        %s717 = scalar_lea.vmem %s2, %s716
      $region40: #{_lambda_.14} parent=35 // pred_fallthru
        _
    $region36: #{_lambda_.14} parent=5 // pred_fallthru
      _
  $region6: #{_lambda_.14} parent=0 // loop_footer
    %s12 = sadd.s32 1, %s8
  $region7: #{_lambda_.14} parent=0 // loop_footer_branch
    %7 = sbr.rel target = $region3
  $region8: #{_lambda_.14} parent=0 // loop_exit
    _

// kernel: _lambda_.16
$region0: #{_lambda_.16}
  #allocation0 [shape = 'u32[]', space=smem, size = 0x4, offset = 0x4, fixed_abs, tag = 'smem constant byte address 0x4 - core index']
  #allocation1 [shape = 'u32[144,128]{1,0:T(1,128)}', space=vmem, size = 0x12000, scoped, tag = 'internal scratch']
  #allocation2 [shape = 'f32[16,64]{1,0:T(8,128)}', space=vmem, size = 0x2000, scoped, tag = 'scratch operand']
  %s0 = inlined_call_operand.vmem [shape: bf16[16,32], index: 0, kind: input, shape index: {}]
  %s1 = inlined_call_operand.vmem [shape: bf16[32,64], index: 1, kind: input, shape index: {}]
  %s2 = inlined_call_operand.vmem [shape: f32[1,64], index: 2, kind: input, shape index: {}]
  %s3 = inlined_call_operand.vmem [shape: bf16[16,64], index: 3, kind: output, shape index: {}]
  %s4 = sld [smem:[#allocation0]]
  $region30: #{_lambda_.16} parent=0
    _
  %s6 = ssub.s32 1, %s4
  %s7 = scalar_select 0, %s6, %s4
  // Predicated region
  $region2: #{_lambda_.16} parent=0 // pred_check
    _
  $region3: #{_lambda_.16} parent=0 // pred_check_branch
    %9 = sbr.rel (0) target = $region5
  $region4: #{_lambda_.16} parent=0 // pred_region
    _
  $region5: #{_lambda_.16} parent=0 // pred_fallthru
    _
  // Predicated region
  $region6: #{_lambda_.16} parent=0 // pred_check
    _
  $region7: #{_lambda_.16} parent=0 // pred_check_branch
    %11 = sbr.rel (0) target = $region9
  $region8: #{_lambda_.16} parent=0 // pred_region
    _
  $region9: #{_lambda_.16} parent=0 // pred_fallthru
    _
  // Predicated region
  $region10: #{_lambda_.16} parent=0 // pred_check
    _
  $region11: #{_lambda_.16} parent=0 // pred_check_branch
    %13 = sbr.rel (0) target = $region13
  $region12: #{_lambda_.16} parent=0 // pred_region
    _
  $region13: #{_lambda_.16} parent=0 // pred_fallthru
    _
  %p15 = scmp.eq.s32.totalorder 0, 0
  // Predicated region
  $region14: #{_lambda_.16} parent=0 // pred_check
    %p16 = pneg %p15
  $region15: #{_lambda_.16} parent=0 // pred_check_branch
    %18 = sbr.rel (%p16) target = $region17
  $region16: #{_lambda_.16} parent=0 // pred_region
    %vm19 = vcmask 523264
    %20 = vst.msk [vmem:[#allocation2] sm:$0xff] %vm19, 0.0
    %21 = vst.msk [vmem:[#allocation2 + $0x8] sm:$0xff] %vm19, 0.0
  $region17: #{_lambda_.16} parent=0 // pred_fallthru
    _
  %v22 = vld [vmem:[#allocation2] sm:$0xff]
  %v23 = vld [vmem:[#allocation2 + $0x8] sm:$0xff]
  %v24 = vld [vmem:[%s0] sm:$0xf]
  %v25 = vld [vmem:[%s0 + $0x4] sm:$0xf]
  %v26 = vld [vmem:[%s1] sm:$0xf]
  %v27 = vld [vmem:[%s1 + $0x4] sm:$0xf]
  %v28 = vld [vmem:[%s1 + $0x8] sm:$0xf]
  %v29 = vld [vmem:[%s1 + $0xc] sm:$0xf]
  %v32 = vunpack.c.l.b16 %v24
  %v33 = vunpack.c.l.b16 %v25
  %v34 = vpack.c.b16 %v33, %v32
  %v39 = vunpack.c.l.b16 %v26
  %v40 = vunpack.c.l.b16 %v27
  %v41 = vunpack.c.l.b16 %v28
  %v42 = vunpack.c.l.b16 %v29
  %v43 = vpack.c.b16 %v40, %v39
  %v44 = vpack.c.b16 %v42, %v41
  %vm47 = vcmask 261120
  %v49 = vsel %vm47, %v34, 0
  %51 = vmatprep.subr.bf16.mxu0 0
  %52 = vmatpush1.bf16.msra.mxu0 %v43
  %53 = vmatprep.subr.bf16.mxu0 0
  %54 = vmatpush1.bf16.msra.mxu0 %v44
  %55 = vmatprep.subr.bf16.mxu0 0
  %56 = vmatpush1.bf16.msra.mxu0 0
  %57 = vmatprep.subr.bf16.mxu0 0
  %58 = vmatpush1.bf16.msra.mxu0 0
  %59 = vmatprep.subr.bf16.mxu0 0
  %60 = vmatpush1.bf16.msra.mxu0 0
  %61 = vmatprep.subr.bf16.mxu0 0
  %62 = vmatpush1.bf16.msra.mxu0 0
  %63 = vmatprep.subr.bf16.mxu0 0
  %64 = vmatpush1.bf16.msra.mxu0 0
  %65 = vmatprep.subr.bf16.mxu0 0
  %66 = vmatpush1.bf16.msra.mxu0 0
  %67 = vmatprep.subr.bf16.mxu0 0
  %68 = vmatpush1.bf16.msra.mxu0 0
  %69 = vmatprep.subr.bf16.mxu0 0
  %70 = vmatpush1.bf16.msra.mxu0 0
  %71 = vmatprep.subr.bf16.mxu0 0
  %72 = vmatpush1.bf16.msra.mxu0 0
  %73 = vmatprep.subr.bf16.mxu0 0
  %74 = vmatpush1.bf16.msra.mxu0 0
  %75 = vmatprep.subr.bf16.mxu0 0
  %76 = vmatpush1.bf16.msra.mxu0 0
  %77 = vmatprep.subr.bf16.mxu0 0
  %78 = vmatpush1.bf16.msra.mxu0 0
  %79 = vmatprep.subr.bf16.mxu0 0
  %80 = vmatpush1.bf16.msra.mxu0 0
  %81 = vmatprep.subr.bf16.mxu0 0
  %82 = vmatpush1.bf16.msra.mxu0 0
  %83 = vmatprep.mubr.bf16.mxu0 0
  %84 = vmatmul.mubr.bf16.gmra.mrb[0].mxu0 %v49
  %v85 = vpop.f32.mrb[0].mxu0
  %v86 = vadd.f32 0.0, %v85
  %v87 = vpop.f32.mrb[0].mxu0
  %v88 = vpop.f32.mrb[0].mxu0
  %v89 = vadd.f32 0.0, %v88
  %v90 = vpop.f32.mrb[0].mxu0
  %91 = vdwg.mxu0
  %v92 = vadd.f32 %v22, %v86
  %v93 = vadd.f32 %v23, %v89
  %vm94 = vcmask 523264
  %95 = vst.msk [vmem:[#allocation2] sm:$0xff] %vm94, %v92
  %96 = vst.msk [vmem:[#allocation2 + $0x8] sm:$0xff] %vm94, %v93
  // Predicated region
  $region18: #{_lambda_.16} parent=0 // pred_check
    %p97 = pneg %p15
  $region19: #{_lambda_.16} parent=0 // pred_check_branch
    %99 = sbr.rel (%p97) target = $region21
  $region20: #{_lambda_.16} parent=0 // pred_region
    %v100 = vld [vmem:[#allocation2] sm:$0xff]
    %v101 = vld [vmem:[#allocation2 + $0x8] sm:$0xff]
    %v102 = vld [vmem:[%s2] sm:$0x1]
    %v104 = vlaneseq
    %v105 = vshrl.u32 %v104, 7
    %v106 = vsub.s32 0, %v105
    %v107 = vrot.slane %v102, %v106
    %v109 = vadd.f32 %v100, %v107
    %v110 = vadd.f32 %v101, %v107
    %v111 = vmul.f32 %v109, 0.5
    %v112 = vmul.f32 %v110, 0.5
    %v113 = vmul.f32 %v109, 0.044715
    %v114 = vmul.f32 %v110, 0.044715
    %v115 = vmul.f32 %v113, %v109
    %v116 = vmul.f32 %v114, %v110
    %v117 = vmul.f32 %v115, %v109
    %v118 = vmul.f32 %v116, %v110
    %v119 = vadd.f32 %v109, %v117
    %v120 = vadd.f32 %v110, %v118
    %v121 = vmul.f32 %v119, 0.7978846
    %v122 = vmul.f32 %v120, 0.7978846
    %v123 = vtanh.pop %v121
    %v124 = vtanh.pop %v122
    %v125 = vadd.f32 %v123, 1.0
    %v126 = vadd.f32 %v124, 1.0
    %v127 = vmul.f32 %v111, %v125
    %v128 = vmul.f32 %v112, %v126
    %v129 = vpack.c.bf16 %v128, %v127
    %v131 = vunpack.c.l.b16 %v129
    %v132 = vunpack.c.h.b16 %v129
    %v133 = vpack.c.b16 %v131, %v131
    %v134 = vpack.c.b16 %v132, %v132
    %vm137 = vcmask 519168
    %138 = vst.msk [vmem:[%s3] sm:$0xf] %vm137, %v133
    %139 = vst.msk [vmem:[%s3 + $0x4] sm:$0xf] %vm137, %v134
  $region21: #{_lambda_.16} parent=0 // pred_fallthru
    _
  // Predicated region
  $region22: #{_lambda_.16} parent=0 // pred_check
    _
  $region23: #{_lambda_.16} parent=0 // pred_check_branch
    %141 = sbr.rel (0) target = $region25
  $region24: #{_lambda_.16} parent=0 // pred_region
    _
  $region25: #{_lambda_.16} parent=0 // pred_fallthru
    _
  // Predicated region
  $region26: #{_lambda_.16} parent=0 // pred_check
    _
  $region27: #{_lambda_.16} parent=0 // pred_check_branch
    %143 = sbr.rel (0) target = $region29
  $region28: #{_lambda_.16} parent=0 // pred_region
    _
  $region29: #{_lambda_.16} parent=0 // pred_fallthru
    _

// kernel: _lambda_.17
$region0: #{_lambda_.17}
  #allocation0 [shape = 'u32[]', space=smem, size = 0x4, offset = 0x4, fixed_abs, tag = 'smem constant byte address 0x4 - core index']
  #allocation1 [shape = 'u32[144,128]{1,0:T(1,128)}', space=vmem, size = 0x12000, scoped, tag = 'internal scratch']
  #allocation2 [shape = 'f32[16,32]{1,0:T(8,128)}', space=vmem, size = 0x2000, scoped, tag = 'scratch operand']
  %s0 = inlined_call_operand.vmem [shape: bf16[16,64], index: 0, kind: input, shape index: {}]
  %s1 = inlined_call_operand.vmem [shape: bf16[64,32], index: 1, kind: input, shape index: {}]
  %s2 = inlined_call_operand.vmem [shape: f32[1,32], index: 2, kind: input, shape index: {}]
  %s3 = inlined_call_operand.vmem [shape: bf16[16,32], index: 3, kind: input, shape index: {}]
  %s4 = inlined_call_operand.vmem [shape: f32[1,32], index: 4, kind: input, shape index: {}]
  %s5 = inlined_call_operand.vmem [shape: f32[1,32], index: 5, kind: input, shape index: {}]
  %s6 = inlined_call_operand.vmem [shape: bf16[16,32], index: 6, kind: output, shape index: {}]
  %s7 = sld [smem:[#allocation0]]
  $region42: #{_lambda_.17} parent=0
    _
  %s9 = ssub.s32 1, %s7
  %s10 = scalar_select 0, %s9, %s7
  // Predicated region
  $region2: #{_lambda_.17} parent=0 // pred_check
    _
  $region3: #{_lambda_.17} parent=0 // pred_check_branch
    %12 = sbr.rel (0) target = $region5
  $region4: #{_lambda_.17} parent=0 // pred_region
    _
  $region5: #{_lambda_.17} parent=0 // pred_fallthru
    _
  // Predicated region
  $region6: #{_lambda_.17} parent=0 // pred_check
    _
  $region7: #{_lambda_.17} parent=0 // pred_check_branch
    %14 = sbr.rel (0) target = $region9
  $region8: #{_lambda_.17} parent=0 // pred_region
    _
  $region9: #{_lambda_.17} parent=0 // pred_fallthru
    _
  // Predicated region
  $region10: #{_lambda_.17} parent=0 // pred_check
    _
  $region11: #{_lambda_.17} parent=0 // pred_check_branch
    %16 = sbr.rel (0) target = $region13
  $region12: #{_lambda_.17} parent=0 // pred_region
    _
  $region13: #{_lambda_.17} parent=0 // pred_fallthru
    _
  // Predicated region
  $region14: #{_lambda_.17} parent=0 // pred_check
    _
  $region15: #{_lambda_.17} parent=0 // pred_check_branch
    %18 = sbr.rel (0) target = $region17
  $region16: #{_lambda_.17} parent=0 // pred_region
    _
  $region17: #{_lambda_.17} parent=0 // pred_fallthru
    _
  // Predicated region
  $region18: #{_lambda_.17} parent=0 // pred_check
    _
  $region19: #{_lambda_.17} parent=0 // pred_check_branch
    %20 = sbr.rel (0) target = $region21
  $region20: #{_lambda_.17} parent=0 // pred_region
    _
  $region21: #{_lambda_.17} parent=0 // pred_fallthru
    _
  // Predicated region
  $region22: #{_lambda_.17} parent=0 // pred_check
    _
  $region23: #{_lambda_.17} parent=0 // pred_check_branch
    %22 = sbr.rel (0) target = $region25
  $region24: #{_lambda_.17} parent=0 // pred_region
    _
  $region25: #{_lambda_.17} parent=0 // pred_fallthru
    _
  %p24 = scmp.eq.s32.totalorder 0, 0
  // Predicated region
  $region26: #{_lambda_.17} parent=0 // pred_check
    %p25 = pneg %p24
  $region27: #{_lambda_.17} parent=0 // pred_check_branch
    %27 = sbr.rel (%p25) target = $region29
  $region28: #{_lambda_.17} parent=0 // pred_region
    %vm28 = vcmask 261120
    %29 = vst.msk [vmem:[#allocation2] sm:$0xff] %vm28, 0.0
    %30 = vst.msk [vmem:[#allocation2 + $0x8] sm:$0xff] %vm28, 0.0
  $region29: #{_lambda_.17} parent=0 // pred_fallthru
    _
  %v31 = vld [vmem:[#allocation2] sm:$0xff]
  %v32 = vld [vmem:[#allocation2 + $0x8] sm:$0xff]
  %v33 = vld [vmem:[%s0] sm:$0xf]
  %v34 = vld [vmem:[%s0 + $0x4] sm:$0xf]
  %v35 = vld [vmem:[%s1] sm:$0xf]
  %v36 = vld [vmem:[%s1 + $0x4] sm:$0xf]
  %v37 = vld [vmem:[%s1 + $0x8] sm:$0xf]
  %v38 = vld [vmem:[%s1 + $0xc] sm:$0xf]
  %v39 = vld [vmem:[%s1 + $0x10] sm:$0xf]
  %v40 = vld [vmem:[%s1 + $0x14] sm:$0xf]
  %v41 = vld [vmem:[%s1 + $0x18] sm:$0xf]
  %v42 = vld [vmem:[%s1 + $0x1c] sm:$0xf]
  %v45 = vunpack.c.l.b16 %v33
  %v46 = vunpack.c.l.b16 %v34
  %v47 = vpack.c.b16 %v46, %v45
  %v56 = vunpack.c.l.b16 %v35
  %v57 = vunpack.c.l.b16 %v36
  %v58 = vunpack.c.l.b16 %v37
  %v59 = vunpack.c.l.b16 %v38
  %v60 = vunpack.c.l.b16 %v39
  %v61 = vunpack.c.l.b16 %v40
  %v62 = vunpack.c.l.b16 %v41
  %v63 = vunpack.c.l.b16 %v42
  %v64 = vpack.c.b16 %v57, %v56
  %v65 = vpack.c.b16 %v59, %v58
  %v66 = vpack.c.b16 %v61, %v60
  %v67 = vpack.c.b16 %v63, %v62
  %vm72 = vcmask 523264
  %v74 = vsel %vm72, %v47, 0
  %76 = vmatprep.subr.bf16.mxu0 0
  %77 = vmatpush1.bf16.msra.mxu0 %v64
  %78 = vmatprep.subr.bf16.mxu0 0
  %79 = vmatpush1.bf16.msra.mxu0 %v65
  %80 = vmatprep.subr.bf16.mxu0 0
  %81 = vmatpush1.bf16.msra.mxu0 %v66
  %82 = vmatprep.subr.bf16.mxu0 0
  %83 = vmatpush1.bf16.msra.mxu0 %v67
  %84 = vmatprep.subr.bf16.mxu0 0
  %85 = vmatpush1.bf16.msra.mxu0 0
  %86 = vmatprep.subr.bf16.mxu0 0
  %87 = vmatpush1.bf16.msra.mxu0 0
  %88 = vmatprep.subr.bf16.mxu0 0
  %89 = vmatpush1.bf16.msra.mxu0 0
  %90 = vmatprep.subr.bf16.mxu0 0
  %91 = vmatpush1.bf16.msra.mxu0 0
  %92 = vmatprep.subr.bf16.mxu0 0
  %93 = vmatpush1.bf16.msra.mxu0 0
  %94 = vmatprep.subr.bf16.mxu0 0
  %95 = vmatpush1.bf16.msra.mxu0 0
  %96 = vmatprep.subr.bf16.mxu0 0
  %97 = vmatpush1.bf16.msra.mxu0 0
  %98 = vmatprep.subr.bf16.mxu0 0
  %99 = vmatpush1.bf16.msra.mxu0 0
  %100 = vmatprep.subr.bf16.mxu0 0
  %101 = vmatpush1.bf16.msra.mxu0 0
  %102 = vmatprep.subr.bf16.mxu0 0
  %103 = vmatpush1.bf16.msra.mxu0 0
  %104 = vmatprep.subr.bf16.mxu0 0
  %105 = vmatpush1.bf16.msra.mxu0 0
  %106 = vmatprep.subr.bf16.mxu0 0
  %107 = vmatpush1.bf16.msra.mxu0 0
  %108 = vmatprep.mubr.bf16.mxu0 0
  %109 = vmatmul.mubr.bf16.gmra.mrb[0].mxu0 %v74
  %v110 = vpop.f32.mrb[0].mxu0
  %v111 = vadd.f32 0.0, %v110
  %v112 = vpop.f32.mrb[0].mxu0
  %v113 = vpop.f32.mrb[0].mxu0
  %v114 = vadd.f32 0.0, %v113
  %v115 = vpop.f32.mrb[0].mxu0
  %116 = vdwg.mxu0
  %v117 = vadd.f32 %v31, %v111
  %v118 = vadd.f32 %v32, %v114
  %vm119 = vcmask 261120
  %120 = vst.msk [vmem:[#allocation2] sm:$0xff] %vm119, %v117
  %121 = vst.msk [vmem:[#allocation2 + $0x8] sm:$0xff] %vm119, %v118
  // Predicated region
  $region30: #{_lambda_.17} parent=0 // pred_check
    %p122 = pneg %p24
  $region31: #{_lambda_.17} parent=0 // pred_check_branch
    %124 = sbr.rel (%p122) target = $region33
  $region32: #{_lambda_.17} parent=0 // pred_region
    %v125 = vld [vmem:[#allocation2] sm:$0xff]
    %v126 = vld [vmem:[#allocation2 + $0x8] sm:$0xff]
    %v127 = vld [vmem:[%s2] sm:$0x1]
    %v129 = vlaneseq
    %v130 = vshrl.u32 %v129, 7
    %v131 = vsub.s32 0, %v130
    %v132 = vrot.slane %v127, %v131
    %v134 = vadd.f32 %v125, %v132
    %v135 = vadd.f32 %v126, %v132
    %v136 = vld [vmem:[%s3] sm:$0xf]
    %v137 = vld [vmem:[%s3 + $0x4] sm:$0xf]
    %v138 = vunpack.c.l.bf16 %v136
    %v139 = vunpack.c.l.bf16 %v137
    %v140 = vadd.f32 %v134, %v138
    %v141 = vadd.f32 %v135, %v139
    %v142 = vsel %vm119, %v140, 0.0
    %143 = vadd.xlane.f32.xlu0 %v142
    %v144 = vpop.xlane.xlu0 %143
    %v145 = vsel %vm119, %v141, 0.0
    %146 = vadd.xlane.f32.xlu0 %v145
    %v147 = vpop.xlane.xlu0 %146
    %v148 = vrcp.pop 32.0
    %v149 = vmul.f32 %v144, %v148
    %v150 = vmul.f32 %v147, %v148
    %v151 = vsub.f32 %v140, %v149
    %v152 = vsub.f32 %v141, %v150
    %v153 = vmul.f32 %v151, %v151
    %v154 = vmul.f32 %v152, %v152
    %v155 = vsel %vm119, %v153, 0.0
    %156 = vadd.xlane.f32.xlu0 %v155
    %v157 = vpop.xlane.xlu0 %156
    %v158 = vsel %vm119, %v154, 0.0
    %159 = vadd.xlane.f32.xlu0 %v158
    %v160 = vpop.xlane.xlu0 %159
    %v161 = vmul.f32 %v157, %v148
    %v162 = vmul.f32 %v160, %v148
    %v163 = vadd.f32 %v161, 1e-12
    %v164 = vadd.f32 %v162, 1e-12
    %v165 = vrsqrt.pop %v163
    %v166 = vrsqrt.pop %v164
    %v167 = vmul.f32 %v151, %v165
    %v168 = vmul.f32 %v152, %v166
    %v169 = vld [vmem:[%s4] sm:$0x1]
    %v171 = vlaneseq
    %v172 = vshrl.u32 %v171, 7
    %v173 = vsub.s32 0, %v172
    %v174 = vrot.slane %v169, %v173
    %v176 = vmul.f32 %v167, %v174
    %v177 = vmul.f32 %v168, %v174
    %v178 = vld [vmem:[%s5] sm:$0x1]
    %v180 = vlaneseq
    %v181 = vshrl.u32 %v180, 7
    %v182 = vsub.s32 0, %v181
    %v183 = vrot.slane %v178, %v182
    %v185 = vadd.f32 %v176, %v183
    %v186 = vadd.f32 %v177, %v183
    %v187 = vpack.c.bf16 %v186, %v185
    %v189 = vunpack.c.l.b16 %v187
    %v190 = vunpack.c.h.b16 %v187
    %v191 = vpack.c.b16 %v189, %v189
    %v192 = vpack.c.b16 %v190, %v190
    %vm195 = vcmask 257024
    %196 = vst.msk [vmem:[%s6] sm:$0xf] %vm195, %v191
    %197 = vst.msk [vmem:[%s6 + $0x4] sm:$0xf] %vm195, %v192
  $region33: #{_lambda_.17} parent=0 // pred_fallthru
    _
  // Predicated region
  $region34: #{_lambda_.17} parent=0 // pred_check
    _
  $region35: #{_lambda_.17} parent=0 // pred_check_branch
    %199 = sbr.rel (0) target = $region37
  $region36: #{_lambda_.17} parent=0 // pred_region
    _
  $region37: #{_lambda_.17} parent=0 // pred_fallthru
    _
  // Predicated region
  $region38: #{_lambda_.17} parent=0 // pred_check
    _
  $region39: #{_lambda_.17} parent=0 // pred_check_branch
    %201 = sbr.rel (0) target = $region41
  $region40: #{_lambda_.17} parent=0 // pred_region
    _
  $region41: #{_lambda_.17} parent=0 // pred_fallthru
    _

// kernel: _lambda_.23
$region0: #{_lambda_.23}
  #allocation0 [shape = 'u32[]', space=smem, size = 0x4, offset = 0x4, fixed_abs, tag = 'smem constant byte address 0x4 - core index']
  #allocation1 [shape = 'u32[144,128]{1,0:T(1,128)}', space=vmem, size = 0x12000, scoped, tag = 'internal scratch']
  %s0 = inlined_call_operand.vmem [shape: bf16[2,32], index: 0, kind: input, shape index: {}]
  %s1 = inlined_call_operand.vmem [shape: bf16[32,32], index: 1, kind: input, shape index: {}]
  %s2 = inlined_call_operand.vmem [shape: f32[1,32], index: 2, kind: input, shape index: {}]
  %s3 = inlined_call_operand.vmem [shape: bf16[32,12], index: 3, kind: input, shape index: {}]
  %s4 = inlined_call_operand.vmem [shape: f32[1,12], index: 4, kind: input, shape index: {}]
  %s5 = inlined_call_operand.vmem [shape: f32[2,12], index: 5, kind: output, shape index: {}]
  %s6 = sld [smem:[#allocation0]]
  $region30: #{_lambda_.23} parent=0
    _
  %s8 = ssub.s32 1, %s6
  %s9 = scalar_select 0, %s8, %s6
  // Predicated region
  $region2: #{_lambda_.23} parent=0 // pred_check
    _
  $region3: #{_lambda_.23} parent=0 // pred_check_branch
    %11 = sbr.rel (0) target = $region5
  $region4: #{_lambda_.23} parent=0 // pred_region
    _
  $region5: #{_lambda_.23} parent=0 // pred_fallthru
    _
  // Predicated region
  $region6: #{_lambda_.23} parent=0 // pred_check
    _
  $region7: #{_lambda_.23} parent=0 // pred_check_branch
    %13 = sbr.rel (0) target = $region9
  $region8: #{_lambda_.23} parent=0 // pred_region
    _
  $region9: #{_lambda_.23} parent=0 // pred_fallthru
    _
  // Predicated region
  $region10: #{_lambda_.23} parent=0 // pred_check
    _
  $region11: #{_lambda_.23} parent=0 // pred_check_branch
    %15 = sbr.rel (0) target = $region13
  $region12: #{_lambda_.23} parent=0 // pred_region
    _
  $region13: #{_lambda_.23} parent=0 // pred_fallthru
    _
  // Predicated region
  $region14: #{_lambda_.23} parent=0 // pred_check
    _
  $region15: #{_lambda_.23} parent=0 // pred_check_branch
    %17 = sbr.rel (0) target = $region17
  $region16: #{_lambda_.23} parent=0 // pred_region
    _
  $region17: #{_lambda_.23} parent=0 // pred_fallthru
    _
  // Predicated region
  $region18: #{_lambda_.23} parent=0 // pred_check
    _
  $region19: #{_lambda_.23} parent=0 // pred_check_branch
    %19 = sbr.rel (0) target = $region21
  $region20: #{_lambda_.23} parent=0 // pred_region
    _
  $region21: #{_lambda_.23} parent=0 // pred_fallthru
    _
  %v21 = vld [vmem:[%s0] sm:$0x1]
  %v22 = vld [vmem:[%s1] sm:$0xf]
  %v23 = vld [vmem:[%s1 + $0x4] sm:$0xf]
  %v24 = vld [vmem:[%s1 + $0x8] sm:$0xf]
  %v25 = vld [vmem:[%s1 + $0xc] sm:$0xf]
  %v26 = vld [vmem:[%s2] sm:$0x1]
  %v28 = vlaneseq
  %v29 = vshrl.u32 %v28, 7
  %v30 = vsub.s32 0, %v29
  %v31 = vrot.slane %v26, %v30
  %v37 = vunpack.c.l.b16 %v22
  %v38 = vunpack.c.l.b16 %v23
  %v39 = vunpack.c.l.b16 %v24
  %v40 = vunpack.c.l.b16 %v25
  %v41 = vpack.c.b16 %v38, %v37
  %v42 = vpack.c.b16 %v40, %v39
  %vm45 = vcmask 261120
  %v47 = vsel %vm45, %v21, 0
  %49 = vmatprep.subr.bf16.mxu0 0
  %50 = vmatpush1.bf16.msra.mxu0 %v41
  %51 = vmatprep.subr.bf16.mxu0 0
  %52 = vmatpush1.bf16.msra.mxu0 %v42
  %53 = vmatprep.subr.bf16.mxu0 0
  %54 = vmatpush1.bf16.msra.mxu0 0
  %55 = vmatprep.subr.bf16.mxu0 0
  %56 = vmatpush1.bf16.msra.mxu0 0
  %57 = vmatprep.subr.bf16.mxu0 0
  %58 = vmatpush1.bf16.msra.mxu0 0
  %59 = vmatprep.subr.bf16.mxu0 0
  %60 = vmatpush1.bf16.msra.mxu0 0
  %61 = vmatprep.subr.bf16.mxu0 0
  %62 = vmatpush1.bf16.msra.mxu0 0
  %63 = vmatprep.subr.bf16.mxu0 0
  %64 = vmatpush1.bf16.msra.mxu0 0
  %65 = vmatprep.subr.bf16.mxu0 0
  %66 = vmatpush1.bf16.msra.mxu0 0
  %67 = vmatprep.subr.bf16.mxu0 0
  %68 = vmatpush1.bf16.msra.mxu0 0
  %69 = vmatprep.subr.bf16.mxu0 0
  %70 = vmatpush1.bf16.msra.mxu0 0
  %71 = vmatprep.subr.bf16.mxu0 0
  %72 = vmatpush1.bf16.msra.mxu0 0
  %73 = vmatprep.subr.bf16.mxu0 0
  %74 = vmatpush1.bf16.msra.mxu0 0
  %75 = vmatprep.subr.bf16.mxu0 0
  %76 = vmatpush1.bf16.msra.mxu0 0
  %77 = vmatprep.subr.bf16.mxu0 0
  %78 = vmatpush1.bf16.msra.mxu0 0
  %79 = vmatprep.subr.bf16.mxu0 0
  %80 = vmatpush1.bf16.msra.mxu0 0
  %81 = vmatprep.mubr.bf16.mxu0 0
  %82 = vmatmul.mubr.bf16.gmra.mrb[0].mxu0 %v47
  %v83 = vpop.f32.mrb[0].mxu0
  %v84 = vadd.f32 %v31, %v83
  %v85 = vpop.f32.mrb[0].mxu0
  %v86 = vpop.f32.mrb[0].mxu0
  %v87 = vpop.f32.mrb[0].mxu0
  %88 = vdwg.mxu0
  %v89 = vtanh.pop %v84
  %v90 = vpack.c.bf16 %v89, %v89
  %v91 = vld [vmem:[%s3] sm:$0xf]
  %v92 = vld [vmem:[%s3 + $0x4] sm:$0xf]
  %v93 = vld [vmem:[%s3 + $0x8] sm:$0xf]
  %v94 = vld [vmem:[%s3 + $0xc] sm:$0xf]
  %v95 = vld [vmem:[%s4] sm:$0x1]
  %v97 = vlaneseq
  %v98 = vshrl.u32 %v97, 7
  %v99 = vsub.s32 0, %v98
  %v100 = vrot.slane %v95, %v99
  %v106 = vunpack.c.l.b16 %v91
  %v107 = vunpack.c.l.b16 %v92
  %v108 = vunpack.c.l.b16 %v93
  %v109 = vunpack.c.l.b16 %v94
  %v110 = vpack.c.b16 %v107, %v106
  %v111 = vpack.c.b16 %v109, %v108
  %v115 = vsel %vm45, %v90, 0
  %117 = vmatprep.subr.bf16.mxu0 0
  %118 = vmatpush1.bf16.msra.mxu0 %v110
  %119 = vmatprep.subr.bf16.mxu0 0
  %120 = vmatpush1.bf16.msra.mxu0 %v111
  %121 = vmatprep.subr.bf16.mxu0 0
  %122 = vmatpush1.bf16.msra.mxu0 0
  %123 = vmatprep.subr.bf16.mxu0 0
  %124 = vmatpush1.bf16.msra.mxu0 0
  %125 = vmatprep.subr.bf16.mxu0 0
  %126 = vmatpush1.bf16.msra.mxu0 0
  %127 = vmatprep.subr.bf16.mxu0 0
  %128 = vmatpush1.bf16.msra.mxu0 0
  %129 = vmatprep.subr.bf16.mxu0 0
  %130 = vmatpush1.bf16.msra.mxu0 0
  %131 = vmatprep.subr.bf16.mxu0 0
  %132 = vmatpush1.bf16.msra.mxu0 0
  %133 = vmatprep.subr.bf16.mxu0 0
  %134 = vmatpush1.bf16.msra.mxu0 0
  %135 = vmatprep.subr.bf16.mxu0 0
  %136 = vmatpush1.bf16.msra.mxu0 0
  %137 = vmatprep.subr.bf16.mxu0 0
  %138 = vmatpush1.bf16.msra.mxu0 0
  %139 = vmatprep.subr.bf16.mxu0 0
  %140 = vmatpush1.bf16.msra.mxu0 0
  %141 = vmatprep.subr.bf16.mxu0 0
  %142 = vmatpush1.bf16.msra.mxu0 0
  %143 = vmatprep.subr.bf16.mxu0 0
  %144 = vmatpush1.bf16.msra.mxu0 0
  %145 = vmatprep.subr.bf16.mxu0 0
  %146 = vmatpush1.bf16.msra.mxu0 0
  %147 = vmatprep.subr.bf16.mxu0 0
  %148 = vmatpush1.bf16.msra.mxu0 0
  %149 = vmatprep.mubr.bf16.mxu0 0
  %150 = vmatmul.mubr.bf16.gmra.mrb[0].mxu0 %v115
  %v151 = vpop.f32.mrb[0].mxu0
  %v152 = vadd.f32 %v100, %v151
  %v153 = vpop.f32.mrb[0].mxu0
  %v154 = vpop.f32.mrb[0].mxu0
  %v155 = vpop.f32.mrb[0].mxu0
  %156 = vdwg.mxu0
  %vm157 = vcmask 91136
  %158 = vst.msk [vmem:[%s5] sm:$0x3] %vm157, %v152
  // Predicated region
  $region22: #{_lambda_.23} parent=0 // pred_check
    _
  $region23: #{_lambda_.23} parent=0 // pred_check_branch
    %160 = sbr.rel (0) target = $region25
  $region24: #{_lambda_.23} parent=0 // pred_region
    _
  $region25: #{_lambda_.23} parent=0 // pred_fallthru
    _
  // Predicated region
  $region26: #{_lambda_.23} parent=0 // pred_check
    _
  $region27: #{_lambda_.23} parent=0 // pred_check_branch
    %162 = sbr.rel (0) target = $region29
  $region28: #{_lambda_.23} parent=0 // pred_region
    _
  $region29: #{_lambda_.23} parent=0 // pred_fallthru
    _

</llo_original>
